<compile_context>
chip_gen: v5e
topology: v5e:2x2
jax: 0.10.0
libtpu: 0.0.40
codegen_flags: <defaults>
</compile_context>

<pallas_src>
import numpy as np
import jax
import jax.numpy as jnp
from jax.experimental import pallas as pl
from jax.experimental.pallas import tpu as pltpu

LANE = 128            # lane width (last-dim alignment)
BATCH_TILE_ALIGN = 16 # bf16 sublane packing => second-to-last dim multiple of 16
MAX_TILE_BATCH = 1024 # VMEM guard for very large batches


def _round_up(n, m):
    return ((n + m - 1) // m) * m


def _num_tensorcores():
    """Best-effort TensorCore count of device 0 (2 on v7x, 1 on v5e/v6e)."""
    try:
        d = jax.devices()[0]
        for attr in ("num_cores", "core_count"):
            v = getattr(d, attr, None)
            if isinstance(v, int) and v > 0:
                return int(v)
    except Exception:
        pass
    return 1


# -----------------------------------------------------------------------------
# Kernel
# -----------------------------------------------------------------------------
def _make_vae_kernel(num_enc_layers, num_dec_layers, stack_dims, latent_pad):
    """Fused VAE forward kernel.

    Ref order:
      x (bf16 batch tile), eps (f32 batch tile),
      w_stack (bf16, VMEM-resident), b_stack (f32, resident),
      w_head (bf16, resident), b_head (f32, resident),
      recon_out (f32), mean_logvar_out (f32).

    `stack_dims[l] = (kp, np)` is the padded (in, out) width of stacked layer l;
    the per-layer static slice keeps each matmul at its natural padded size.
    """

    def kernel(x_ref, eps_ref, w_ref, b_ref, wh_ref, bh_ref, recon_ref, mlv_ref):
        def dense(h, li):
            kp, np_ = stack_dims[li]
            w = w_ref[li, :kp, :np_]              # bf16 (kp, np_), VMEM-resident
            b = b_ref[li, :, :np_]                # f32  (1,  np_)
            # bf16 x bf16 MXU matmul with f32 accumulation; bias add in f32.
            return jnp.dot(h.astype(jnp.bfloat16), w,
                           preferred_element_type=jnp.float32) + b

        li = 0

        # ---------------- Encoder ----------------
        # TODO(synk): nn.Dropout(dropout_rate=0.0) is identity; omitted.
        h = x_ref[...]                            # already bf16
        for _ in range(num_enc_layers):
            h = jnp.maximum(dense(h, li), 0.0)    # ReLU in f32
            li += 1

        # Fused (mean | log_var) head: one matmul, one wide lane-dense store.
        head = jnp.dot(h.astype(jnp.bfloat16), wh_ref[...],
                       preferred_element_type=jnp.float32) + bh_ref[...]
        mean = head[:, :latent_pad]
        log_vars = head[:, latent_pad:]

        # ---------------- Reparametrize ----------------
        # Invariant: padded latent lanes carry mean=0, log_var=0 (=> std=1) and
        # eps=0, so z stays exactly 0 there and cannot leak into the decoder.
        std = jnp.exp(0.5 * log_vars)             # f32 EUP
        z = mean + eps_ref[...] * std

        # ---------------- Decoder ----------------
        d = z
        for _ in range(num_dec_layers):
            d = jnp.maximum(dense(d, li), 0.0)
            li += 1
        recon = dense(d, li)

        recon_ref[...] = recon.astype(recon_ref.dtype)
        mlv_ref[...] = head.astype(mlv_ref.dtype)

    return kernel


# -----------------------------------------------------------------------------
# One-time parameter packing (hoisted out of the per-call path)
# -----------------------------------------------------------------------------
def pack_vae_params(params, num_hidden_layers):
    """Pad/stack logical params once; returns device arrays + static metadata."""
    pairs = [(np.asarray(params[2 * i], np.float32),
              np.asarray(params[2 * i + 1], np.float32).reshape(1, -1))
             for i in range(len(params) // 2)]

    num_enc = 1 + num_hidden_layers
    num_dec = 1 + num_hidden_layers
    assert len(pairs) == num_enc + 2 + num_dec + 1

    enc_pairs = pairs[:num_enc]
    wm, bm = pairs[num_enc]
    wv, bv = pairs[num_enc + 1]
    dec_pairs = pairs[num_enc + 2: num_enc + 2 + num_dec]
    wo, bo = pairs[-1]

    input_dim = enc_pairs[0][0].shape[0]
    latent_dim = wm.shape[1]
    output_dim = wo.shape[1]
    h_last = wm.shape[0]

    Ip = _round_up(input_dim, LANE)
    Lp = _round_up(latent_dim, LANE)
    Op = _round_up(output_dim, LANE)
    Hlp = _round_up(h_last, LANE)

    # All non-head layers go into one stack (encoder, decoder, decoder output).
    stack_pairs = enc_pairs + dec_pairs + [(wo, bo)]
    stack_dims = tuple((_round_up(w.shape[0], LANE), _round_up(w.shape[1], LANE))
                       for w, _ in stack_pairs)
    L = len(stack_pairs)
    Kmax = max(k for k, _ in stack_dims)
    Nmax = max(n for _, n in stack_dims)

    w_stack = np.zeros((L, Kmax, Nmax), np.float32)
    b_stack = np.zeros((L, 1, Nmax), np.float32)
    for l, (w, b) in enumerate(stack_pairs):
        w_stack[l, :w.shape[0], :w.shape[1]] = w
        b_stack[l, :, :b.shape[1]] = b

    # Fused (mean | log_var) head: [Hlp, 2*Lp], zeros in padded lanes.
    w_head = np.zeros((Hlp, 2 * Lp), np.float32)
    b_head = np.zeros((1, 2 * Lp), np.float32)
    w_head[:h_last, :latent_dim] = wm
    w_head[:h_last, Lp:Lp + latent_dim] = wv
    b_head[:, :latent_dim] = bm
    b_head[:, Lp:Lp + latent_dim] = bv

    flops_per_row = 2 * sum(int(w.shape[0]) * int(w.shape[1]) for w, _ in pairs)

    return dict(
        w_stack=jnp.asarray(w_stack).astype(jnp.bfloat16),
        b_stack=jnp.asarray(b_stack),
        w_head=jnp.asarray(w_head).astype(jnp.bfloat16),
        b_head=jnp.asarray(b_head),
        meta=dict(num_enc=num_enc, num_dec=num_dec, stack_dims=stack_dims,
                  input_dim=int(input_dim), latent_dim=int(latent_dim),
                  output_dim=int(output_dim), Ip=Ip, Lp=Lp, Op=Op,
                  flops_per_row=int(flops_per_row)),
    )


# -----------------------------------------------------------------------------
# Forward builder: jitted wrapper (only x/eps padding happens per call)
# -----------------------------------------------------------------------------
def make_vae_forward(packed, *, tile_batch=None, num_cores=None):
    meta = packed["meta"]
    w_stack, b_stack = packed["w_stack"], packed["b_stack"]
    w_head, b_head = packed["w_head"], packed["b_head"]
    Ip, Lp, Op = meta["Ip"], meta["Lp"], meta["Op"]
    input_dim, latent_dim = meta["input_dim"], meta["latent_dim"]
    output_dim = meta["output_dim"]

    if num_cores is None:
        num_cores = _num_tensorcores()

    kernel = _make_vae_kernel(meta["num_enc"], meta["num_dec"],
                              meta["stack_dims"], Lp)

    param_bytes = sum(int(a.size) * a.dtype.itemsize
                      for a in (w_stack, b_stack, w_head, b_head))

    @jax.jit
    def forward(x, eps):
        batch = x.shape[0]
        assert x.shape[1] == input_dim and eps.shape == (batch, latent_dim)

        # ---- batch tile: as few / as large grid steps as possible ----
        # Single tile on single-TC chips (v5e/v6e); num_cores balanced tiles on
        # v7x.  TB is a multiple of 16 (bf16 sublane packing / (8,128) rule).
        if tile_batch is not None:
            TB = _round_up(min(int(tile_batch), batch), BATCH_TILE_ALIGN)
        else:
            n_tiles = max(1, min(num_cores, pl.cdiv(batch, BATCH_TILE_ALIGN)))
            TB = _round_up(pl.cdiv(batch, n_tiles), BATCH_TILE_ALIGN)
        TB = min(TB, MAX_TILE_BATCH)
        Bp = _round_up(batch, TB)
        grid = (Bp // TB,)

        # ---- pad activations (zero rows / zero lanes); x pre-cast to bf16 ----
        x_p = jnp.pad(x.astype(jnp.bfloat16),
                      ((0, Bp - batch), (0, Ip - input_dim)))
        eps_p = jnp.pad(eps.astype(jnp.float32),
                        ((0, Bp - batch), (0, Lp - latent_dim)))

        def tile_spec(cols):
            return pl.BlockSpec((TB, cols), lambda i: (i, 0))

        def resident_spec(shape):
            nd = len(shape)
            return pl.BlockSpec(shape, lambda i, _nd=nd: (0,) * _nd)

        in_specs = [tile_spec(Ip), tile_spec(Lp),
                    resident_spec(w_stack.shape), resident_spec(b_stack.shape),
                    resident_spec(w_head.shape), resident_spec(b_head.shape)]
        out_specs = (tile_spec(Op), tile_spec(2 * Lp))
        out_shape = (jax.ShapeDtypeStruct((Bp, Op), jnp.float32),
                     jax.ShapeDtypeStruct((Bp, 2 * Lp), jnp.float32))

        # Tight VMEM request: double-buffered tiles + params + headroom, <=48MiB.
        tile_bytes = TB * (2 * Ip + 4 * Lp + 4 * Op + 4 * 2 * Lp)
        vmem_limit = int(min(48 * 1024 * 1024,
                             2 * (param_bytes + tile_bytes) + (8 << 20)))

        cost = pl.CostEstimate(
            flops=meta["flops_per_row"] * batch,
            transcendentals=batch * latent_dim,
            bytes_accessed=int(x_p.size * 2 + eps_p.size * 4 + param_bytes
                               + Bp * Op * 4 + Bp * 2 * Lp * 4),
        )

        fn = pl.pallas_call(
            kernel,
            out_shape=out_shape,
            grid=grid,
            in_specs=in_specs,
            out_specs=out_specs,
            compiler_params=pltpu.CompilerParams(
                dimension_semantics=("parallel",),   # batch tiles shard across TCs
                vmem_limit_bytes=vmem_limit,
            ),
            cost_estimate=cost,
        )
        recon_p, mlv_p = fn(x_p, eps_p, w_stack, b_stack, w_head, b_head)

        recon = recon_p[:batch, :output_dim]
        mean = mlv_p[:batch, :latent_dim]
        log_vars = mlv_p[:batch, Lp:Lp + latent_dim]
        return recon, mean, log_vars

    return forward


# -----------------------------------------------------------------------------
# Deterministic parameter construction (PyTorch-default-style uniform init)
# -----------------------------------------------------------------------------
def _linear_params(key, fan_in, fan_out):
    kw, kb = jax.random.split(key)
    bound = 1.0 / jnp.sqrt(jnp.float32(fan_in))
    w = jax.random.uniform(kw, (fan_in, fan_out), jnp.float32, -bound, bound)
    b = jax.random.uniform(kb, (1, fan_out), jnp.float32, -bound, bound)
    return w, b


def build_vae_params(key, input_dim, num_hidden_layers, num_hidden_units,
                     latent_dim, output_dim):
    """Logical (unpadded) parameters in the exact order the model consumes them."""
    params = []
    keys = iter(jax.random.split(key, 64))

    # Encoder: input layer
    params += list(_linear_params(next(keys), input_dim, num_hidden_units[0]))
    # Encoder: hidden layers i -> i+1
    for i in range(num_hidden_layers):
        params += list(_linear_params(next(keys),
                                      num_hidden_units[i],
                                      num_hidden_units[i + 1]))
    # Encoder heads
    params += list(_linear_params(next(keys), num_hidden_units[-1], latent_dim))  # means
    params += list(_linear_params(next(keys), num_hidden_units[-1], latent_dim))  # log_vars
    # Decoder: input layer z -> units[-1]
    params += list(_linear_params(next(keys), latent_dim, num_hidden_units[-1]))
    # Decoder hidden layers (reversed): units[i+1] -> units[i]
    for i in reversed(range(num_hidden_layers)):
        params += list(_linear_params(next(keys),
                                      num_hidden_units[i + 1],
                                      num_hidden_units[i]))
    # Decoder output
    params += list(_linear_params(next(keys), num_hidden_units[0], output_dim))
    return params


# -----------------------------------------------------------------------------
# Pure-JAX reference with the same bf16-matmul / f32-accumulate numerics
# -----------------------------------------------------------------------------
def vae_reference(x, eps, params, num_hidden_layers):
    def dense(h, w, b):
        return jnp.dot(h.astype(jnp.bfloat16), w.astype(jnp.bfloat16),
                       preferred_element_type=jnp.float32) + jnp.reshape(b, (1, -1))

    idx = [0]

    def next_wb():
        w, b = params[idx[0]], params[idx[0] + 1]
        idx[0] += 2
        return w, b

    h = x.astype(jnp.float32)
    for _ in range(1 + num_hidden_layers):
        w, b = next_wb()
        h = jnp.maximum(dense(h, w, b), 0.0)
    wm, bm = next_wb()
    wv, bv = next_wb()
    mean = dense(h, wm, bm)
    log_vars = dense(h, wv, bv)
    z = mean + eps * jnp.exp(0.5 * log_vars)
    d = z
    for _ in range(1 + num_hidden_layers):
        w, b = next_wb()
        d = jnp.maximum(dense(d, w, b), 0.0)
    wo, bo = next_wb()
    recon = dense(d, wo, bo)
    return recon, mean, log_vars


# -----------------------------------------------------------------------------
if __name__ == "__main__":
    # Small shapes consistent with the splicing-VAE MLP (non-128 dims exercise
    # the lane padding; batch=200 exercises the big-single-tile path).
    batch = 200
    input_dim = 40
    num_hidden_layers = 2
    num_hidden_units = [64, 48, 56]   # length = num_hidden_layers + 1
    latent_dim = 20
    output_dim = 40

    key = jax.random.PRNGKey(0)
    k_x, k_eps, k_params = jax.random.split(key, 3)

    x = jax.random.normal(k_x, (batch, input_dim), jnp.float32)
    eps = jax.random.normal(k_eps, (batch, latent_dim), jnp.float32)
    params = build_vae_params(k_params, input_dim, num_hidden_layers,
                              num_hidden_units, latent_dim, output_dim)

    # Pack/pad parameters ONCE (hoisted out of the per-call path).
    packed = pack_vae_params(params, num_hidden_layers)
    forward = make_vae_forward(packed)

    recon, mean, log_vars = forward(x, eps)
    jax.block_until_ready((recon, mean, log_vars))

    # Sanity check against a pure-JAX reference with matching numerics.
    r_ref, m_ref, lv_ref = vae_reference(x, eps, params, num_hidden_layers)
    assert recon.shape == (batch, output_dim) and recon.dtype == jnp.float32
    assert mean.shape == (batch, latent_dim) and mean.dtype == jnp.float32
    assert log_vars.shape == (batch, latent_dim) and log_vars.dtype == jnp.float32
    assert jnp.allclose(recon, r_ref, atol=2e-3, rtol=2e-3), \
        float(jnp.max(jnp.abs(recon - r_ref)))
    assert jnp.allclose(mean, m_ref, atol=2e-3, rtol=2e-3), \
        float(jnp.max(jnp.abs(mean - m_ref)))
    assert jnp.allclose(log_vars, lv_ref, atol=2e-3, rtol=2e-3), \
        float(jnp.max(jnp.abs(log_vars - lv_ref)))

    print("KERNEL_OK")
</pallas_src>

<mosaic_0001>
module attributes {stable_mosaic.version = 11 : i64} {
  func.func @kernel(%arg0: i32, %arg1: memref<208x128xbf16, #tpu.memory_space<vmem>>, %arg2: memref<208x128xf32, #tpu.memory_space<vmem>>, %arg3: memref<7x128x128xbf16, #tpu.memory_space<vmem>>, %arg4: memref<7x1x128xf32, #tpu.memory_space<vmem>>, %arg5: memref<128x256xbf16, #tpu.memory_space<vmem>>, %arg6: memref<1x256xf32, #tpu.memory_space<vmem>>, %arg7: memref<208x128xf32, #tpu.memory_space<vmem>>, %arg8: memref<208x256xf32, #tpu.memory_space<vmem>>) attributes {dimension_semantics = [#tpu.dimension_semantics<parallel>], iteration_bounds = array<i64: 1>, scalar_prefetch = 0 : i64, scratch_operands = 0 : i64, tpu.core_type = #tpu.core_type<tc>, window_params = [{transform_indices = @transform_0, window_bounds = array<i64: 208, 128>}, {transform_indices = @transform_1, window_bounds = array<i64: 208, 128>}, {pipeline_mode = #tpu.pipeline_mode<synchronous>, transform_indices = @transform_2, window_bounds = array<i64: 7, 128, 128>}, {pipeline_mode = #tpu.pipeline_mode<synchronous>, transform_indices = @transform_3, window_bounds = array<i64: 7, 1, 128>}, {pipeline_mode = #tpu.pipeline_mode<synchronous>, transform_indices = @transform_4, window_bounds = array<i64: 128, 256>}, {pipeline_mode = #tpu.pipeline_mode<synchronous>, transform_indices = @transform_5, window_bounds = array<i64: 1, 256>}, {transform_indices = @transform_6, window_bounds = array<i64: 208, 128>}, {transform_indices = @transform_7, window_bounds = array<i64: 208, 256>}]} {
    %c0 = arith.constant 0 : index
    %c0_0 = arith.constant 0 : index
    %0 = vector.load %arg1[%c0, %c0_0] : memref<208x128xbf16, #tpu.memory_space<vmem>>, vector<208x128xbf16>
    %c0_1 = arith.constant 0 : index
    %c0_2 = arith.constant 0 : index
    %c0_3 = arith.constant 0 : index
    %1 = vector.load %arg3[%c0_1, %c0_2, %c0_3] : memref<7x128x128xbf16, #tpu.memory_space<vmem>>, vector<1x128x128xbf16>
    %2 = vector.shape_cast %1 : vector<1x128x128xbf16> to vector<128x128xbf16>
    %c0_4 = arith.constant 0 : index
    %c0_5 = arith.constant 0 : index
    %c0_6 = arith.constant 0 : index
    %3 = vector.load %arg4[%c0_4, %c0_5, %c0_6] : memref<7x1x128xf32, #tpu.memory_space<vmem>>, vector<1x1x128xf32>
    %4 = vector.shape_cast %3 : vector<1x1x128xf32> to vector<1x128xf32>
    %cst = arith.constant dense<0.000000e+00> : vector<208x128xf32>
    %5 = tpu.matmul %0, %2, %cst {dimension_numbers = #tpu.dot_dimension_numbers<[1], [0], [0], [1], [0, 0, 1, 1], [], []>} : vector<208x128xbf16>, vector<128x128xbf16>, vector<208x128xf32> -> vector<208x128xf32>
    %6 = vector.broadcast %4 : vector<1x128xf32> to vector<208x128xf32>
    %7 = arith.addf %5, %6 : vector<208x128xf32>
    %cst_7 = arith.constant 0.000000e+00 : f32
    %8 = vector.broadcast %cst_7 : f32 to vector<208x128xf32>
    %9 = arith.maximumf %7, %8 : vector<208x128xf32>
    %c1 = arith.constant 1 : index
    %c0_8 = arith.constant 0 : index
    %c0_9 = arith.constant 0 : index
    %10 = vector.load %arg3[%c1, %c0_8, %c0_9] : memref<7x128x128xbf16, #tpu.memory_space<vmem>>, vector<1x128x128xbf16>
    %11 = vector.shape_cast %10 : vector<1x128x128xbf16> to vector<128x128xbf16>
    %c1_10 = arith.constant 1 : index
    %c0_11 = arith.constant 0 : index
    %c0_12 = arith.constant 0 : index
    %12 = vector.load %arg4[%c1_10, %c0_11, %c0_12] : memref<7x1x128xf32, #tpu.memory_space<vmem>>, vector<1x1x128xf32>
    %13 = vector.shape_cast %12 : vector<1x1x128xf32> to vector<1x128xf32>
    %14 = arith.truncf %9 : vector<208x128xf32> to vector<208x128xbf16>
    %cst_13 = arith.constant dense<0.000000e+00> : vector<208x128xf32>
    %15 = tpu.matmul %14, %11, %cst_13 {dimension_numbers = #tpu.dot_dimension_numbers<[1], [0], [0], [1], [0, 0, 1, 1], [], []>} : vector<208x128xbf16>, vector<128x128xbf16>, vector<208x128xf32> -> vector<208x128xf32>
    %16 = vector.broadcast %13 : vector<1x128xf32> to vector<208x128xf32>
    %17 = arith.addf %15, %16 : vector<208x128xf32>
    %cst_14 = arith.constant 0.000000e+00 : f32
    %18 = vector.broadcast %cst_14 : f32 to vector<208x128xf32>
    %19 = arith.maximumf %17, %18 : vector<208x128xf32>
    %c2 = arith.constant 2 : index
    %c0_15 = arith.constant 0 : index
    %c0_16 = arith.constant 0 : index
    %20 = vector.load %arg3[%c2, %c0_15, %c0_16] : memref<7x128x128xbf16, #tpu.memory_space<vmem>>, vector<1x128x128xbf16>
    %21 = vector.shape_cast %20 : vector<1x128x128xbf16> to vector<128x128xbf16>
    %c2_17 = arith.constant 2 : index
    %c0_18 = arith.constant 0 : index
    %c0_19 = arith.constant 0 : index
    %22 = vector.load %arg4[%c2_17, %c0_18, %c0_19] : memref<7x1x128xf32, #tpu.memory_space<vmem>>, vector<1x1x128xf32>
    %23 = vector.shape_cast %22 : vector<1x1x128xf32> to vector<1x128xf32>
    %24 = arith.truncf %19 : vector<208x128xf32> to vector<208x128xbf16>
    %cst_20 = arith.constant dense<0.000000e+00> : vector<208x128xf32>
    %25 = tpu.matmul %24, %21, %cst_20 {dimension_numbers = #tpu.dot_dimension_numbers<[1], [0], [0], [1], [0, 0, 1, 1], [], []>} : vector<208x128xbf16>, vector<128x128xbf16>, vector<208x128xf32> -> vector<208x128xf32>
    %26 = vector.broadcast %23 : vector<1x128xf32> to vector<208x128xf32>
    %27 = arith.addf %25, %26 : vector<208x128xf32>
    %cst_21 = arith.constant 0.000000e+00 : f32
    %28 = vector.broadcast %cst_21 : f32 to vector<208x128xf32>
    %29 = arith.maximumf %27, %28 : vector<208x128xf32>
    %30 = arith.truncf %29 : vector<208x128xf32> to vector<208x128xbf16>
    %c0_22 = arith.constant 0 : index
    %c0_23 = arith.constant 0 : index
    %31 = vector.load %arg5[%c0_22, %c0_23] : memref<128x256xbf16, #tpu.memory_space<vmem>>, vector<128x256xbf16>
    %cst_24 = arith.constant dense<0.000000e+00> : vector<208x256xf32>
    %32 = tpu.matmul %30, %31, %cst_24 {dimension_numbers = #tpu.dot_dimension_numbers<[1], [0], [0], [1], [0, 0, 1, 1], [], []>} : vector<208x128xbf16>, vector<128x256xbf16>, vector<208x256xf32> -> vector<208x256xf32>
    %c0_25 = arith.constant 0 : index
    %c0_26 = arith.constant 0 : index
    %33 = vector.load %arg6[%c0_25, %c0_26] : memref<1x256xf32, #tpu.memory_space<vmem>>, vector<1x256xf32>
    %34 = vector.broadcast %33 : vector<1x256xf32> to vector<208x256xf32>
    %35 = arith.addf %32, %34 : vector<208x256xf32>
    %36 = vector.extract_strided_slice %35 {offsets = [0, 0], sizes = [208, 128], strides = [1, 1]} : vector<208x256xf32> to vector<208x128xf32>
    %37 = vector.extract_strided_slice %35 {offsets = [0, 128], sizes = [208, 128], strides = [1, 1]} : vector<208x256xf32> to vector<208x128xf32>
    %cst_27 = arith.constant 5.000000e-01 : f32
    %38 = vector.broadcast %cst_27 : f32 to vector<208x128xf32>
    %39 = arith.mulf %38, %37 : vector<208x128xf32>
    %40 = math.exp %39 : vector<208x128xf32>
    %c0_28 = arith.constant 0 : index
    %c0_29 = arith.constant 0 : index
    %41 = vector.load %arg2[%c0_28, %c0_29] : memref<208x128xf32, #tpu.memory_space<vmem>>, vector<208x128xf32>
    %42 = arith.mulf %41, %40 : vector<208x128xf32>
    %43 = arith.addf %36, %42 : vector<208x128xf32>
    %c3 = arith.constant 3 : index
    %c0_30 = arith.constant 0 : index
    %c0_31 = arith.constant 0 : index
    %44 = vector.load %arg3[%c3, %c0_30, %c0_31] : memref<7x128x128xbf16, #tpu.memory_space<vmem>>, vector<1x128x128xbf16>
    %45 = vector.shape_cast %44 : vector<1x128x128xbf16> to vector<128x128xbf16>
    %c3_32 = arith.constant 3 : index
    %c0_33 = arith.constant 0 : index
    %c0_34 = arith.constant 0 : index
    %46 = vector.load %arg4[%c3_32, %c0_33, %c0_34] : memref<7x1x128xf32, #tpu.memory_space<vmem>>, vector<1x1x128xf32>
    %47 = vector.shape_cast %46 : vector<1x1x128xf32> to vector<1x128xf32>
    %48 = arith.truncf %43 : vector<208x128xf32> to vector<208x128xbf16>
    %cst_35 = arith.constant dense<0.000000e+00> : vector<208x128xf32>
    %49 = tpu.matmul %48, %45, %cst_35 {dimension_numbers = #tpu.dot_dimension_numbers<[1], [0], [0], [1], [0, 0, 1, 1], [], []>} : vector<208x128xbf16>, vector<128x128xbf16>, vector<208x128xf32> -> vector<208x128xf32>
    %50 = vector.broadcast %47 : vector<1x128xf32> to vector<208x128xf32>
    %51 = arith.addf %49, %50 : vector<208x128xf32>
    %cst_36 = arith.constant 0.000000e+00 : f32
    %52 = vector.broadcast %cst_36 : f32 to vector<208x128xf32>
    %53 = arith.maximumf %51, %52 : vector<208x128xf32>
    %c4 = arith.constant 4 : index
    %c0_37 = arith.constant 0 : index
    %c0_38 = arith.constant 0 : index
    %54 = vector.load %arg3[%c4, %c0_37, %c0_38] : memref<7x128x128xbf16, #tpu.memory_space<vmem>>, vector<1x128x128xbf16>
    %55 = vector.shape_cast %54 : vector<1x128x128xbf16> to vector<128x128xbf16>
    %c4_39 = arith.constant 4 : index
    %c0_40 = arith.constant 0 : index
    %c0_41 = arith.constant 0 : index
    %56 = vector.load %arg4[%c4_39, %c0_40, %c0_41] : memref<7x1x128xf32, #tpu.memory_space<vmem>>, vector<1x1x128xf32>
    %57 = vector.shape_cast %56 : vector<1x1x128xf32> to vector<1x128xf32>
    %58 = arith.truncf %53 : vector<208x128xf32> to vector<208x128xbf16>
    %cst_42 = arith.constant dense<0.000000e+00> : vector<208x128xf32>
    %59 = tpu.matmul %58, %55, %cst_42 {dimension_numbers = #tpu.dot_dimension_numbers<[1], [0], [0], [1], [0, 0, 1, 1], [], []>} : vector<208x128xbf16>, vector<128x128xbf16>, vector<208x128xf32> -> vector<208x128xf32>
    %60 = vector.broadcast %57 : vector<1x128xf32> to vector<208x128xf32>
    %61 = arith.addf %59, %60 : vector<208x128xf32>
    %cst_43 = arith.constant 0.000000e+00 : f32
    %62 = vector.broadcast %cst_43 : f32 to vector<208x128xf32>
    %63 = arith.maximumf %61, %62 : vector<208x128xf32>
    %c5 = arith.constant 5 : index
    %c0_44 = arith.constant 0 : index
    %c0_45 = arith.constant 0 : index
    %64 = vector.load %arg3[%c5, %c0_44, %c0_45] : memref<7x128x128xbf16, #tpu.memory_space<vmem>>, vector<1x128x128xbf16>
    %65 = vector.shape_cast %64 : vector<1x128x128xbf16> to vector<128x128xbf16>
    %c5_46 = arith.constant 5 : index
    %c0_47 = arith.constant 0 : index
    %c0_48 = arith.constant 0 : index
    %66 = vector.load %arg4[%c5_46, %c0_47, %c0_48] : memref<7x1x128xf32, #tpu.memory_space<vmem>>, vector<1x1x128xf32>
    %67 = vector.shape_cast %66 : vector<1x1x128xf32> to vector<1x128xf32>
    %68 = arith.truncf %63 : vector<208x128xf32> to vector<208x128xbf16>
    %cst_49 = arith.constant dense<0.000000e+00> : vector<208x128xf32>
    %69 = tpu.matmul %68, %65, %cst_49 {dimension_numbers = #tpu.dot_dimension_numbers<[1], [0], [0], [1], [0, 0, 1, 1], [], []>} : vector<208x128xbf16>, vector<128x128xbf16>, vector<208x128xf32> -> vector<208x128xf32>
    %70 = vector.broadcast %67 : vector<1x128xf32> to vector<208x128xf32>
    %71 = arith.addf %69, %70 : vector<208x128xf32>
    %cst_50 = arith.constant 0.000000e+00 : f32
    %72 = vector.broadcast %cst_50 : f32 to vector<208x128xf32>
    %73 = arith.maximumf %71, %72 : vector<208x128xf32>
    %c6 = arith.constant 6 : index
    %c0_51 = arith.constant 0 : index
    %c0_52 = arith.constant 0 : index
    %74 = vector.load %arg3[%c6, %c0_51, %c0_52] : memref<7x128x128xbf16, #tpu.memory_space<vmem>>, vector<1x128x128xbf16>
    %75 = vector.shape_cast %74 : vector<1x128x128xbf16> to vector<128x128xbf16>
    %c6_53 = arith.constant 6 : index
    %c0_54 = arith.constant 0 : index
    %c0_55 = arith.constant 0 : index
    %76 = vector.load %arg4[%c6_53, %c0_54, %c0_55] : memref<7x1x128xf32, #tpu.memory_space<vmem>>, vector<1x1x128xf32>
    %77 = vector.shape_cast %76 : vector<1x1x128xf32> to vector<1x128xf32>
    %78 = arith.truncf %73 : vector<208x128xf32> to vector<208x128xbf16>
    %cst_56 = arith.constant dense<0.000000e+00> : vector<208x128xf32>
    %79 = tpu.matmul %78, %75, %cst_56 {dimension_numbers = #tpu.dot_dimension_numbers<[1], [0], [0], [1], [0, 0, 1, 1], [], []>} : vector<208x128xbf16>, vector<128x128xbf16>, vector<208x128xf32> -> vector<208x128xf32>
    %80 = vector.broadcast %77 : vector<1x128xf32> to vector<208x128xf32>
    %81 = arith.addf %79, %80 : vector<208x128xf32>
    %c0_57 = arith.constant 0 : index
    %c0_58 = arith.constant 0 : index
    %82 = vector.load %arg7[%c0_57, %c0_58] : memref<208x128xf32, #tpu.memory_space<vmem>>, vector<208x128xf32>
    tpu.vector_store %arg7[%c0_57, %c0_58], %81 {strides = array<i32>} : memref<208x128xf32, #tpu.memory_space<vmem>>, vector<208x128xf32>,
    %c0_59 = arith.constant 0 : index
    %c0_60 = arith.constant 0 : index
    %83 = vector.load %arg8[%c0_59, %c0_60] : memref<208x256xf32, #tpu.memory_space<vmem>>, vector<208x256xf32>
    tpu.vector_store %arg8[%c0_59, %c0_60], %35 {strides = array<i32>} : memref<208x256xf32, #tpu.memory_space<vmem>>, vector<208x256xf32>,
    return
  }
  func.func @transform_0(%arg0: i32) -> (i32, i32) {
    %c0_i32 = arith.constant 0 : i32
    %c0_i32_0 = arith.constant 0 : i32
    return %arg0, %c0_i32 : i32, i32
  }
  func.func @transform_1(%arg0: i32) -> (i32, i32) {
    %c0_i32 = arith.constant 0 : i32
    %c0_i32_0 = arith.constant 0 : i32
    return %arg0, %c0_i32 : i32, i32
  }
  func.func @transform_2(%arg0: i32) -> (i32, i32, i32) {
    %c0_i32 = arith.constant 0 : i32
    %c0_i32_0 = arith.constant 0 : i32
    %c0_i32_1 = arith.constant 0 : i32
    %c0_i32_2 = arith.constant 0 : i32
    return %c0_i32, %c0_i32_0, %c0_i32_1 : i32, i32, i32
  }
  func.func @transform_3(%arg0: i32) -> (i32, i32, i32) {
    %c0_i32 = arith.constant 0 : i32
    %c0_i32_0 = arith.constant 0 : i32
    %c0_i32_1 = arith.constant 0 : i32
    %c0_i32_2 = arith.constant 0 : i32
    return %c0_i32, %c0_i32_0, %c0_i32_1 : i32, i32, i32
  }
  func.func @transform_4(%arg0: i32) -> (i32, i32) {
    %c0_i32 = arith.constant 0 : i32
    %c0_i32_0 = arith.constant 0 : i32
    %c0_i32_1 = arith.constant 0 : i32
    return %c0_i32, %c0_i32_0 : i32, i32
  }
  func.func @transform_5(%arg0: i32) -> (i32, i32) {
    %c0_i32 = arith.constant 0 : i32
    %c0_i32_0 = arith.constant 0 : i32
    %c0_i32_1 = arith.constant 0 : i32
    return %c0_i32, %c0_i32_0 : i32, i32
  }
  func.func @transform_6(%arg0: i32) -> (i32, i32) {
    %c0_i32 = arith.constant 0 : i32
    %c0_i32_0 = arith.constant 0 : i32
    return %arg0, %c0_i32 : i32, i32
  }
  func.func @transform_7(%arg0: i32) -> (i32, i32) {
    %c0_i32 = arith.constant 0 : i32
    %c0_i32_0 = arith.constant 0 : i32
    return %arg0, %c0_i32 : i32, i32
  }
}

</mosaic_0001>

<llo_original>
// kernel: forward.1
$region0: #{forward.1}
  #allocation0 [shape = 'u32[]', space=smem, size = 0x4, offset = 0x4, fixed_abs, tag = 'smem constant byte address 0x4 - core index']
  #allocation1 [shape = 'u32[72,128]{1,0:T(1,128)}', space=vmem, size = 0x9000, scoped, tag = 'internal scratch']
  %s0 = inlined_call_operand.vmem [shape: bf16[208,128], index: 0, kind: input, shape index: {}]
  %s1 = inlined_call_operand.vmem [shape: f32[208,128], index: 1, kind: input, shape index: {}]
  %s2 = inlined_call_operand.vmem [shape: bf16[7,128,128], index: 2, kind: input, shape index: {}]
  %s3 = inlined_call_operand.vmem [shape: f32[7,1,128], index: 3, kind: input, shape index: {}]
  %s4 = inlined_call_operand.vmem [shape: bf16[128,256], index: 4, kind: input, shape index: {}]
  %s5 = inlined_call_operand.vmem [shape: f32[1,256], index: 5, kind: input, shape index: {}]
  %s6 = inlined_call_operand.vmem [shape: f32[208,128], index: 6, kind: output, shape index: {0}]
  %s7 = inlined_call_operand.vmem [shape: f32[208,256], index: 7, kind: output, shape index: {1}]
  %8 = xla_tuple %s6, %s7
  %s9 = sld [smem:[#allocation0]]
  $region42: #{forward.1} parent=0
    _
  %s11 = ssub.s32 1, %s9
  %s12 = scalar_select 0, %s11, %s9
  // Predicated region
  $region2: #{forward.1} parent=0 // pred_check
    _
  $region3: #{forward.1} parent=0 // pred_check_branch
    %14 = sbr.rel (0) target = $region5
  $region4: #{forward.1} parent=0 // pred_region
    _
  $region5: #{forward.1} parent=0 // pred_fallthru
    _
  // Predicated region
  $region6: #{forward.1} parent=0 // pred_check
    _
  $region7: #{forward.1} parent=0 // pred_check_branch
    %16 = sbr.rel (0) target = $region9
  $region8: #{forward.1} parent=0 // pred_region
    _
  $region9: #{forward.1} parent=0 // pred_fallthru
    _
  // Predicated region
  $region10: #{forward.1} parent=0 // pred_check
    _
  $region11: #{forward.1} parent=0 // pred_check_branch
    %18 = sbr.rel (0) target = $region13
  $region12: #{forward.1} parent=0 // pred_region
    _
  $region13: #{forward.1} parent=0 // pred_fallthru
    _
  // Predicated region
  $region14: #{forward.1} parent=0 // pred_check
    _
  $region15: #{forward.1} parent=0 // pred_check_branch
    %20 = sbr.rel (0) target = $region17
  $region16: #{forward.1} parent=0 // pred_region
    _
  $region17: #{forward.1} parent=0 // pred_fallthru
    _
  // Predicated region
  $region18: #{forward.1} parent=0 // pred_check
    _
  $region19: #{forward.1} parent=0 // pred_check_branch
    %22 = sbr.rel (0) target = $region21
  $region20: #{forward.1} parent=0 // pred_region
    _
  $region21: #{forward.1} parent=0 // pred_fallthru
    _
  // Predicated region
  $region22: #{forward.1} parent=0 // pred_check
    _
  $region23: #{forward.1} parent=0 // pred_check_branch
    %24 = sbr.rel (0) target = $region25
  $region24: #{forward.1} parent=0 // pred_region
    _
  $region25: #{forward.1} parent=0 // pred_fallthru
    _
  %v25 = vld [vmem:[%s0] sm:$0xf]
  %v26 = vld [vmem:[%s0 + $0x4] sm:$0xf]
  %v27 = vld [vmem:[%s0 + $0x8] sm:$0xf]
  %v28 = vld [vmem:[%s0 + $0xc] sm:$0xf]
  %v29 = vld [vmem:[%s0 + $0x10] sm:$0xf]
  %v30 = vld [vmem:[%s0 + $0x14] sm:$0xf]
  %v31 = vld [vmem:[%s0 + $0x18] sm:$0xf]
  %v32 = vld [vmem:[%s0 + $0x1c] sm:$0xf]
  %v33 = vld [vmem:[%s0 + $0x20] sm:$0xf]
  %v34 = vld [vmem:[%s0 + $0x24] sm:$0xf]
  %v35 = vld [vmem:[%s0 + $0x28] sm:$0xf]
  %v36 = vld [vmem:[%s0 + $0x2c] sm:$0xf]
  %v37 = vld [vmem:[%s0 + $0x30] sm:$0xf]
  %v38 = vld [vmem:[%s0 + $0x34] sm:$0xf]
  %v39 = vld [vmem:[%s0 + $0x38] sm:$0xf]
  %v40 = vld [vmem:[%s0 + $0x3c] sm:$0xf]
  %v41 = vld [vmem:[%s0 + $0x40] sm:$0xf]
  %v42 = vld [vmem:[%s0 + $0x44] sm:$0xf]
  %v43 = vld [vmem:[%s0 + $0x48] sm:$0xf]
  %v44 = vld [vmem:[%s0 + $0x4c] sm:$0xf]
  %v45 = vld [vmem:[%s0 + $0x50] sm:$0xf]
  %v46 = vld [vmem:[%s0 + $0x54] sm:$0xf]
  %v47 = vld [vmem:[%s0 + $0x58] sm:$0xf]
  %v48 = vld [vmem:[%s0 + $0x5c] sm:$0xf]
  %v49 = vld [vmem:[%s0 + $0x60] sm:$0xf]
  %v50 = vld [vmem:[%s0 + $0x64] sm:$0xf]
  %v51 = vld [vmem:[%s2] sm:$0xf]
  %v52 = vld [vmem:[%s2 + $0x4] sm:$0xf]
  %v53 = vld [vmem:[%s2 + $0x8] sm:$0xf]
  %v54 = vld [vmem:[%s2 + $0xc] sm:$0xf]
  %v55 = vld [vmem:[%s2 + $0x10] sm:$0xf]
  %v56 = vld [vmem:[%s2 + $0x14] sm:$0xf]
  %v57 = vld [vmem:[%s2 + $0x18] sm:$0xf]
  %v58 = vld [vmem:[%s2 + $0x1c] sm:$0xf]
  %v59 = vld [vmem:[%s2 + $0x20] sm:$0xf]
  %v60 = vld [vmem:[%s2 + $0x24] sm:$0xf]
  %v61 = vld [vmem:[%s2 + $0x28] sm:$0xf]
  %v62 = vld [vmem:[%s2 + $0x2c] sm:$0xf]
  %v63 = vld [vmem:[%s2 + $0x30] sm:$0xf]
  %v64 = vld [vmem:[%s2 + $0x34] sm:$0xf]
  %v65 = vld [vmem:[%s2 + $0x38] sm:$0xf]
  %v66 = vld [vmem:[%s2 + $0x3c] sm:$0xf]
  %v67 = vld [vmem:[%s3] sm:$0x1]
  %v69 = vperm.slane %v67, 0
  %v97 = vunpack.c.l.b16 %v25
  %v98 = vunpack.c.l.b16 %v26
  %v99 = vunpack.c.l.b16 %v27
  %v100 = vunpack.c.l.b16 %v28
  %v101 = vunpack.c.l.b16 %v29
  %v102 = vunpack.c.l.b16 %v30
  %v103 = vunpack.c.l.b16 %v31
  %v104 = vunpack.c.l.b16 %v32
  %v105 = vunpack.c.l.b16 %v33
  %v106 = vunpack.c.l.b16 %v34
  %v107 = vunpack.c.l.b16 %v35
  %v108 = vunpack.c.l.b16 %v36
  %v109 = vunpack.c.l.b16 %v37
  %v110 = vunpack.c.l.b16 %v38
  %v111 = vunpack.c.l.b16 %v39
  %v112 = vunpack.c.l.b16 %v40
  %v113 = vunpack.c.l.b16 %v41
  %v114 = vunpack.c.l.b16 %v42
  %v115 = vunpack.c.l.b16 %v43
  %v116 = vunpack.c.l.b16 %v44
  %v117 = vunpack.c.l.b16 %v45
  %v118 = vunpack.c.l.b16 %v46
  %v119 = vunpack.c.l.b16 %v47
  %v120 = vunpack.c.l.b16 %v48
  %v121 = vunpack.c.l.b16 %v49
  %v122 = vunpack.c.l.b16 %v50
  %v123 = vpack.c.b16 %v98, %v97
  %v124 = vpack.c.b16 %v100, %v99
  %v125 = vpack.c.b16 %v102, %v101
  %v126 = vpack.c.b16 %v104, %v103
  %v127 = vpack.c.b16 %v106, %v105
  %v128 = vpack.c.b16 %v108, %v107
  %v129 = vpack.c.b16 %v110, %v109
  %v130 = vpack.c.b16 %v112, %v111
  %v131 = vpack.c.b16 %v114, %v113
  %v132 = vpack.c.b16 %v116, %v115
  %v133 = vpack.c.b16 %v118, %v117
  %v134 = vpack.c.b16 %v120, %v119
  %v135 = vpack.c.b16 %v122, %v121
  %v165 = vunpack.c.l.b16 %v51
  %v166 = vunpack.c.l.b16 %v52
  %v167 = vunpack.c.l.b16 %v53
  %v168 = vunpack.c.l.b16 %v54
  %v169 = vunpack.c.l.b16 %v55
  %v170 = vunpack.c.l.b16 %v56
  %v171 = vunpack.c.l.b16 %v57
  %v172 = vunpack.c.l.b16 %v58
  %v173 = vunpack.c.l.b16 %v59
  %v174 = vunpack.c.l.b16 %v60
  %v175 = vunpack.c.l.b16 %v61
  %v176 = vunpack.c.l.b16 %v62
  %v177 = vunpack.c.l.b16 %v63
  %v178 = vunpack.c.l.b16 %v64
  %v179 = vunpack.c.l.b16 %v65
  %v180 = vunpack.c.l.b16 %v66
  %v181 = vpack.c.b16 %v166, %v165
  %v182 = vpack.c.b16 %v168, %v167
  %v183 = vpack.c.b16 %v170, %v169
  %v184 = vpack.c.b16 %v172, %v171
  %v185 = vpack.c.b16 %v174, %v173
  %v186 = vpack.c.b16 %v176, %v175
  %v187 = vpack.c.b16 %v178, %v177
  %v188 = vpack.c.b16 %v180, %v179
  %197 = vmatpush.bf16.msra.mxu0 %v188
  %198 = vmatpush.bf16.msra.mxu0 %v187
  %199 = vmatpush.bf16.msra.mxu0 %v186
  %200 = vmatpush.bf16.msra.mxu0 %v185
  %201 = vmatpush.bf16.msra.mxu0 %v184
  %202 = vmatpush.bf16.msra.mxu0 %v183
  %203 = vmatpush.bf16.msra.mxu0 %v182
  %204 = vmatpush.bf16.msra.mxu0 %v181
  %205 = vmatmul.bf16.gmra.mxu0 %v123
  %v206 = vpop.f32.mrf.mxu0
  %v207 = vadd.f32 %v69, %v206
  %v208 = vpop.f32.mrf.mxu0
  %v209 = vadd.f32 %v69, %v208
  %210 = vmatmul.bf16.gmra.mxu0 %v124
  %v211 = vpop.f32.mrf.mxu0
  %v212 = vadd.f32 %v69, %v211
  %v213 = vpop.f32.mrf.mxu0
  %v214 = vadd.f32 %v69, %v213
  %215 = vmatmul.bf16.gmra.mxu0 %v125
  %v216 = vpop.f32.mrf.mxu0
  %v217 = vadd.f32 %v69, %v216
  %v218 = vpop.f32.mrf.mxu0
  %v219 = vadd.f32 %v69, %v218
  %220 = vmatmul.bf16.gmra.mxu0 %v126
  %v221 = vpop.f32.mrf.mxu0
  %v222 = vadd.f32 %v69, %v221
  %v223 = vpop.f32.mrf.mxu0
  %v224 = vadd.f32 %v69, %v223
  %225 = vmatmul.bf16.gmra.mxu0 %v127
  %v226 = vpop.f32.mrf.mxu0
  %v227 = vadd.f32 %v69, %v226
  %v228 = vpop.f32.mrf.mxu0
  %v229 = vadd.f32 %v69, %v228
  %230 = vmatmul.bf16.gmra.mxu0 %v128
  %v231 = vpop.f32.mrf.mxu0
  %v232 = vadd.f32 %v69, %v231
  %v233 = vpop.f32.mrf.mxu0
  %v234 = vadd.f32 %v69, %v233
  %235 = vmatmul.bf16.gmra.mxu0 %v129
  %v236 = vpop.f32.mrf.mxu0
  %v237 = vadd.f32 %v69, %v236
  %v238 = vpop.f32.mrf.mxu0
  %v239 = vadd.f32 %v69, %v238
  %240 = vmatmul.bf16.gmra.mxu0 %v130
  %v241 = vpop.f32.mrf.mxu0
  %v242 = vadd.f32 %v69, %v241
  %v243 = vpop.f32.mrf.mxu0
  %v244 = vadd.f32 %v69, %v243
  %245 = vmatmul.bf16.gmra.mxu0 %v131
  %v246 = vpop.f32.mrf.mxu0
  %v247 = vadd.f32 %v69, %v246
  %v248 = vpop.f32.mrf.mxu0
  %v249 = vadd.f32 %v69, %v248
  %250 = vmatmul.bf16.gmra.mxu0 %v132
  %v251 = vpop.f32.mrf.mxu0
  %v252 = vadd.f32 %v69, %v251
  %v253 = vpop.f32.mrf.mxu0
  %v254 = vadd.f32 %v69, %v253
  %255 = vmatmul.bf16.gmra.mxu0 %v133
  %v256 = vpop.f32.mrf.mxu0
  %v257 = vadd.f32 %v69, %v256
  %v258 = vpop.f32.mrf.mxu0
  %v259 = vadd.f32 %v69, %v258
  %260 = vmatmul.bf16.gmra.mxu0 %v134
  %v261 = vpop.f32.mrf.mxu0
  %v262 = vadd.f32 %v69, %v261
  %v263 = vpop.f32.mrf.mxu0
  %v264 = vadd.f32 %v69, %v263
  %265 = vmatmul.bf16.gmra.mxu0 %v135
  %v266 = vpop.f32.mrf.mxu0
  %v267 = vadd.f32 %v69, %v266
  %v268 = vpop.f32.mrf.mxu0
  %v269 = vadd.f32 %v69, %v268
  %270 = vdwg.mxu0
  %v271 = vmax.f32 %v207, 0.0
  %v272 = vmax.f32 %v209, 0.0
  %v273 = vmax.f32 %v212, 0.0
  %v274 = vmax.f32 %v214, 0.0
  %v275 = vmax.f32 %v217, 0.0
  %v276 = vmax.f32 %v219, 0.0
  %v277 = vmax.f32 %v222, 0.0
  %v278 = vmax.f32 %v224, 0.0
  %v279 = vmax.f32 %v227, 0.0
  %v280 = vmax.f32 %v229, 0.0
  %v281 = vmax.f32 %v232, 0.0
  %v282 = vmax.f32 %v234, 0.0
  %v283 = vmax.f32 %v237, 0.0
  %v284 = vmax.f32 %v239, 0.0
  %v285 = vmax.f32 %v242, 0.0
  %v286 = vmax.f32 %v244, 0.0
  %v287 = vmax.f32 %v247, 0.0
  %v288 = vmax.f32 %v249, 0.0
  %v289 = vmax.f32 %v252, 0.0
  %v290 = vmax.f32 %v254, 0.0
  %v291 = vmax.f32 %v257, 0.0
  %v292 = vmax.f32 %v259, 0.0
  %v293 = vmax.f32 %v262, 0.0
  %v294 = vmax.f32 %v264, 0.0
  %v295 = vmax.f32 %v267, 0.0
  %v296 = vmax.f32 %v269, 0.0
  %s297 = scalar_lea.vmem %s2, 64
  %v298 = vld [vmem:[%s297] sm:$0xf]
  %v299 = vld [vmem:[%s297 + $0x4] sm:$0xf]
  %v300 = vld [vmem:[%s297 + $0x8] sm:$0xf]
  %v301 = vld [vmem:[%s297 + $0xc] sm:$0xf]
  %v302 = vld [vmem:[%s297 + $0x10] sm:$0xf]
  %v303 = vld [vmem:[%s297 + $0x14] sm:$0xf]
  %v304 = vld [vmem:[%s297 + $0x18] sm:$0xf]
  %v305 = vld [vmem:[%s297 + $0x1c] sm:$0xf]
  %v306 = vld [vmem:[%s297 + $0x20] sm:$0xf]
  %v307 = vld [vmem:[%s297 + $0x24] sm:$0xf]
  %v308 = vld [vmem:[%s297 + $0x28] sm:$0xf]
  %v309 = vld [vmem:[%s297 + $0x2c] sm:$0xf]
  %v310 = vld [vmem:[%s297 + $0x30] sm:$0xf]
  %v311 = vld [vmem:[%s297 + $0x34] sm:$0xf]
  %v312 = vld [vmem:[%s297 + $0x38] sm:$0xf]
  %v313 = vld [vmem:[%s297 + $0x3c] sm:$0xf]
  %s314 = scalar_lea.vmem %s3, 1
  %v315 = vld [vmem:[%s314] sm:$0x1]
  %v316 = vpack.c.bf16 %v272, %v271
  %v317 = vpack.c.bf16 %v274, %v273
  %v318 = vpack.c.bf16 %v276, %v275
  %v319 = vpack.c.bf16 %v278, %v277
  %v320 = vpack.c.bf16 %v280, %v279
  %v321 = vpack.c.bf16 %v282, %v281
  %v322 = vpack.c.bf16 %v284, %v283
  %v323 = vpack.c.bf16 %v286, %v285
  %v324 = vpack.c.bf16 %v288, %v287
  %v325 = vpack.c.bf16 %v290, %v289
  %v326 = vpack.c.bf16 %v292, %v291
  %v327 = vpack.c.bf16 %v294, %v293
  %v328 = vpack.c.bf16 %v296, %v295
  %v330 = vperm.slane %v315, 0
  %v348 = vunpack.c.l.b16 %v298
  %v349 = vunpack.c.l.b16 %v299
  %v350 = vunpack.c.l.b16 %v300
  %v351 = vunpack.c.l.b16 %v301
  %v352 = vunpack.c.l.b16 %v302
  %v353 = vunpack.c.l.b16 %v303
  %v354 = vunpack.c.l.b16 %v304
  %v355 = vunpack.c.l.b16 %v305
  %v356 = vunpack.c.l.b16 %v306
  %v357 = vunpack.c.l.b16 %v307
  %v358 = vunpack.c.l.b16 %v308
  %v359 = vunpack.c.l.b16 %v309
  %v360 = vunpack.c.l.b16 %v310
  %v361 = vunpack.c.l.b16 %v311
  %v362 = vunpack.c.l.b16 %v312
  %v363 = vunpack.c.l.b16 %v313
  %v364 = vpack.c.b16 %v349, %v348
  %v365 = vpack.c.b16 %v351, %v350
  %v366 = vpack.c.b16 %v353, %v352
  %v367 = vpack.c.b16 %v355, %v354
  %v368 = vpack.c.b16 %v357, %v356
  %v369 = vpack.c.b16 %v359, %v358
  %v370 = vpack.c.b16 %v361, %v360
  %v371 = vpack.c.b16 %v363, %v362
  %380 = vmatpush.bf16.msra.mxu0 %v371
  %381 = vmatpush.bf16.msra.mxu0 %v370
  %382 = vmatpush.bf16.msra.mxu0 %v369
  %383 = vmatpush.bf16.msra.mxu0 %v368
  %384 = vmatpush.bf16.msra.mxu0 %v367
  %385 = vmatpush.bf16.msra.mxu0 %v366
  %386 = vmatpush.bf16.msra.mxu0 %v365
  %387 = vmatpush.bf16.msra.mxu0 %v364
  %388 = vmatmul.bf16.gmra.mxu0 %v316
  %v389 = vpop.f32.mrf.mxu0
  %v390 = vadd.f32 %v330, %v389
  %v391 = vpop.f32.mrf.mxu0
  %v392 = vadd.f32 %v330, %v391
  %393 = vmatmul.bf16.gmra.mxu0 %v317
  %v394 = vpop.f32.mrf.mxu0
  %v395 = vadd.f32 %v330, %v394
  %v396 = vpop.f32.mrf.mxu0
  %v397 = vadd.f32 %v330, %v396
  %398 = vmatmul.bf16.gmra.mxu0 %v318
  %v399 = vpop.f32.mrf.mxu0
  %v400 = vadd.f32 %v330, %v399
  %v401 = vpop.f32.mrf.mxu0
  %v402 = vadd.f32 %v330, %v401
  %403 = vmatmul.bf16.gmra.mxu0 %v319
  %v404 = vpop.f32.mrf.mxu0
  %v405 = vadd.f32 %v330, %v404
  %v406 = vpop.f32.mrf.mxu0
  %v407 = vadd.f32 %v330, %v406
  %408 = vmatmul.bf16.gmra.mxu0 %v320
  %v409 = vpop.f32.mrf.mxu0
  %v410 = vadd.f32 %v330, %v409
  %v411 = vpop.f32.mrf.mxu0
  %v412 = vadd.f32 %v330, %v411
  %413 = vmatmul.bf16.gmra.mxu0 %v321
  %v414 = vpop.f32.mrf.mxu0
  %v415 = vadd.f32 %v330, %v414
  %v416 = vpop.f32.mrf.mxu0
  %v417 = vadd.f32 %v330, %v416
  %418 = vmatmul.bf16.gmra.mxu0 %v322
  %v419 = vpop.f32.mrf.mxu0
  %v420 = vadd.f32 %v330, %v419
  %v421 = vpop.f32.mrf.mxu0
  %v422 = vadd.f32 %v330, %v421
  %423 = vmatmul.bf16.gmra.mxu0 %v323
  %v424 = vpop.f32.mrf.mxu0
  %v425 = vadd.f32 %v330, %v424
  %v426 = vpop.f32.mrf.mxu0
  %v427 = vadd.f32 %v330, %v426
  %428 = vmatmul.bf16.gmra.mxu0 %v324
  %v429 = vpop.f32.mrf.mxu0
  %v430 = vadd.f32 %v330, %v429
  %v431 = vpop.f32.mrf.mxu0
  %v432 = vadd.f32 %v330, %v431
  %433 = vmatmul.bf16.gmra.mxu0 %v325
  %v434 = vpop.f32.mrf.mxu0
  %v435 = vadd.f32 %v330, %v434
  %v436 = vpop.f32.mrf.mxu0
  %v437 = vadd.f32 %v330, %v436
  %438 = vmatmul.bf16.gmra.mxu0 %v326
  %v439 = vpop.f32.mrf.mxu0
  %v440 = vadd.f32 %v330, %v439
  %v441 = vpop.f32.mrf.mxu0
  %v442 = vadd.f32 %v330, %v441
  %443 = vmatmul.bf16.gmra.mxu0 %v327
  %v444 = vpop.f32.mrf.mxu0
  %v445 = vadd.f32 %v330, %v444
  %v446 = vpop.f32.mrf.mxu0
  %v447 = vadd.f32 %v330, %v446
  %448 = vmatmul.bf16.gmra.mxu0 %v328
  %v449 = vpop.f32.mrf.mxu0
  %v450 = vadd.f32 %v330, %v449
  %v451 = vpop.f32.mrf.mxu0
  %v452 = vadd.f32 %v330, %v451
  %453 = vdwg.mxu0
  %v454 = vmax.f32 %v390, 0.0
  %v455 = vmax.f32 %v392, 0.0
  %v456 = vmax.f32 %v395, 0.0
  %v457 = vmax.f32 %v397, 0.0
  %v458 = vmax.f32 %v400, 0.0
  %v459 = vmax.f32 %v402, 0.0
  %v460 = vmax.f32 %v405, 0.0
  %v461 = vmax.f32 %v407, 0.0
  %v462 = vmax.f32 %v410, 0.0
  %v463 = vmax.f32 %v412, 0.0
  %v464 = vmax.f32 %v415, 0.0
  %v465 = vmax.f32 %v417, 0.0
  %v466 = vmax.f32 %v420, 0.0
  %v467 = vmax.f32 %v422, 0.0
  %v468 = vmax.f32 %v425, 0.0
  %v469 = vmax.f32 %v427, 0.0
  %v470 = vmax.f32 %v430, 0.0
  %v471 = vmax.f32 %v432, 0.0
  %v472 = vmax.f32 %v435, 0.0
  %v473 = vmax.f32 %v437, 0.0
  %v474 = vmax.f32 %v440, 0.0
  %v475 = vmax.f32 %v442, 0.0
  %v476 = vmax.f32 %v445, 0.0
  %v477 = vmax.f32 %v447, 0.0
  %v478 = vmax.f32 %v450, 0.0
  %v479 = vmax.f32 %v452, 0.0
  %s480 = scalar_lea.vmem %s2, 128
  %v481 = vld [vmem:[%s480] sm:$0xf]
  %v482 = vld [vmem:[%s480 + $0x4] sm:$0xf]
  %v483 = vld [vmem:[%s480 + $0x8] sm:$0xf]
  %v484 = vld [vmem:[%s480 + $0xc] sm:$0xf]
  %v485 = vld [vmem:[%s480 + $0x10] sm:$0xf]
  %v486 = vld [vmem:[%s480 + $0x14] sm:$0xf]
  %v487 = vld [vmem:[%s480 + $0x18] sm:$0xf]
  %v488 = vld [vmem:[%s480 + $0x1c] sm:$0xf]
  %v489 = vld [vmem:[%s480 + $0x20] sm:$0xf]
  %v490 = vld [vmem:[%s480 + $0x24] sm:$0xf]
  %v491 = vld [vmem:[%s480 + $0x28] sm:$0xf]
  %v492 = vld [vmem:[%s480 + $0x2c] sm:$0xf]
  %v493 = vld [vmem:[%s480 + $0x30] sm:$0xf]
  %v494 = vld [vmem:[%s480 + $0x34] sm:$0xf]
  %v495 = vld [vmem:[%s480 + $0x38] sm:$0xf]
  %v496 = vld [vmem:[%s480 + $0x3c] sm:$0xf]
  %s497 = scalar_lea.vmem %s3, 2
  %v498 = vld [vmem:[%s497] sm:$0x1]
  %v499 = vpack.c.bf16 %v455, %v454
  %v500 = vpack.c.bf16 %v457, %v456
  %v501 = vpack.c.bf16 %v459, %v458
  %v502 = vpack.c.bf16 %v461, %v460
  %v503 = vpack.c.bf16 %v463, %v462
  %v504 = vpack.c.bf16 %v465, %v464
  %v505 = vpack.c.bf16 %v467, %v466
  %v506 = vpack.c.bf16 %v469, %v468
  %v507 = vpack.c.bf16 %v471, %v470
  %v508 = vpack.c.bf16 %v473, %v472
  %v509 = vpack.c.bf16 %v475, %v474
  %v510 = vpack.c.bf16 %v477, %v476
  %v511 = vpack.c.bf16 %v479, %v478
  %v513 = vperm.slane %v498, 0
  %v531 = vunpack.c.l.b16 %v481
  %v532 = vunpack.c.l.b16 %v482
  %v533 = vunpack.c.l.b16 %v483
  %v534 = vunpack.c.l.b16 %v484
  %v535 = vunpack.c.l.b16 %v485
  %v536 = vunpack.c.l.b16 %v486
  %v537 = vunpack.c.l.b16 %v487
  %v538 = vunpack.c.l.b16 %v488
  %v539 = vunpack.c.l.b16 %v489
  %v540 = vunpack.c.l.b16 %v490
  %v541 = vunpack.c.l.b16 %v491
  %v542 = vunpack.c.l.b16 %v492
  %v543 = vunpack.c.l.b16 %v493
  %v544 = vunpack.c.l.b16 %v494
  %v545 = vunpack.c.l.b16 %v495
  %v546 = vunpack.c.l.b16 %v496
  %v547 = vpack.c.b16 %v532, %v531
  %v548 = vpack.c.b16 %v534, %v533
  %v549 = vpack.c.b16 %v536, %v535
  %v550 = vpack.c.b16 %v538, %v537
  %v551 = vpack.c.b16 %v540, %v539
  %v552 = vpack.c.b16 %v542, %v541
  %v553 = vpack.c.b16 %v544, %v543
  %v554 = vpack.c.b16 %v546, %v545
  %563 = vmatpush.bf16.msra.mxu0 %v554
  %564 = vmatpush.bf16.msra.mxu0 %v553
  %565 = vmatpush.bf16.msra.mxu0 %v552
  %566 = vmatpush.bf16.msra.mxu0 %v551
  %567 = vmatpush.bf16.msra.mxu0 %v550
  %568 = vmatpush.bf16.msra.mxu0 %v549
  %569 = vmatpush.bf16.msra.mxu0 %v548
  %570 = vmatpush.bf16.msra.mxu0 %v547
  %571 = vmatmul.bf16.gmra.mxu0 %v499
  %v572 = vpop.f32.mrf.mxu0
  %v573 = vadd.f32 %v513, %v572
  %v574 = vpop.f32.mrf.mxu0
  %v575 = vadd.f32 %v513, %v574
  %576 = vmatmul.bf16.gmra.mxu0 %v500
  %v577 = vpop.f32.mrf.mxu0
  %v578 = vadd.f32 %v513, %v577
  %v579 = vpop.f32.mrf.mxu0
  %v580 = vadd.f32 %v513, %v579
  %581 = vmatmul.bf16.gmra.mxu0 %v501
  %v582 = vpop.f32.mrf.mxu0
  %v583 = vadd.f32 %v513, %v582
  %v584 = vpop.f32.mrf.mxu0
  %v585 = vadd.f32 %v513, %v584
  %586 = vmatmul.bf16.gmra.mxu0 %v502
  %v587 = vpop.f32.mrf.mxu0
  %v588 = vadd.f32 %v513, %v587
  %v589 = vpop.f32.mrf.mxu0
  %v590 = vadd.f32 %v513, %v589
  %591 = vmatmul.bf16.gmra.mxu0 %v503
  %v592 = vpop.f32.mrf.mxu0
  %v593 = vadd.f32 %v513, %v592
  %v594 = vpop.f32.mrf.mxu0
  %v595 = vadd.f32 %v513, %v594
  %596 = vmatmul.bf16.gmra.mxu0 %v504
  %v597 = vpop.f32.mrf.mxu0
  %v598 = vadd.f32 %v513, %v597
  %v599 = vpop.f32.mrf.mxu0
  %v600 = vadd.f32 %v513, %v599
  %601 = vmatmul.bf16.gmra.mxu0 %v505
  %v602 = vpop.f32.mrf.mxu0
  %v603 = vadd.f32 %v513, %v602
  %v604 = vpop.f32.mrf.mxu0
  %v605 = vadd.f32 %v513, %v604
  %606 = vmatmul.bf16.gmra.mxu0 %v506
  %v607 = vpop.f32.mrf.mxu0
  %v608 = vadd.f32 %v513, %v607
  %v609 = vpop.f32.mrf.mxu0
  %v610 = vadd.f32 %v513, %v609
  %611 = vmatmul.bf16.gmra.mxu0 %v507
  %v612 = vpop.f32.mrf.mxu0
  %v613 = vadd.f32 %v513, %v612
  %v614 = vpop.f32.mrf.mxu0
  %v615 = vadd.f32 %v513, %v614
  %616 = vmatmul.bf16.gmra.mxu0 %v508
  %v617 = vpop.f32.mrf.mxu0
  %v618 = vadd.f32 %v513, %v617
  %v619 = vpop.f32.mrf.mxu0
  %v620 = vadd.f32 %v513, %v619
  %621 = vmatmul.bf16.gmra.mxu0 %v509
  %v622 = vpop.f32.mrf.mxu0
  %v623 = vadd.f32 %v513, %v622
  %v624 = vpop.f32.mrf.mxu0
  %v625 = vadd.f32 %v513, %v624
  %626 = vmatmul.bf16.gmra.mxu0 %v510
  %v627 = vpop.f32.mrf.mxu0
  %v628 = vadd.f32 %v513, %v627
  %v629 = vpop.f32.mrf.mxu0
  %v630 = vadd.f32 %v513, %v629
  %631 = vmatmul.bf16.gmra.mxu0 %v511
  %v632 = vpop.f32.mrf.mxu0
  %v633 = vadd.f32 %v513, %v632
  %v634 = vpop.f32.mrf.mxu0
  %v635 = vadd.f32 %v513, %v634
  %636 = vdwg.mxu0
  %v637 = vmax.f32 %v573, 0.0
  %v638 = vmax.f32 %v575, 0.0
  %v639 = vmax.f32 %v578, 0.0
  %v640 = vmax.f32 %v580, 0.0
  %v641 = vmax.f32 %v583, 0.0
  %v642 = vmax.f32 %v585, 0.0
  %v643 = vmax.f32 %v588, 0.0
  %v644 = vmax.f32 %v590, 0.0
  %v645 = vmax.f32 %v593, 0.0
  %v646 = vmax.f32 %v595, 0.0
  %v647 = vmax.f32 %v598, 0.0
  %v648 = vmax.f32 %v600, 0.0
  %v649 = vmax.f32 %v603, 0.0
  %v650 = vmax.f32 %v605, 0.0
  %v651 = vmax.f32 %v608, 0.0
  %v652 = vmax.f32 %v610, 0.0
  %v653 = vmax.f32 %v613, 0.0
  %v654 = vmax.f32 %v615, 0.0
  %v655 = vmax.f32 %v618, 0.0
  %v656 = vmax.f32 %v620, 0.0
  %v657 = vmax.f32 %v623, 0.0
  %v658 = vmax.f32 %v625, 0.0
  %v659 = vmax.f32 %v628, 0.0
  %v660 = vmax.f32 %v630, 0.0
  %v661 = vmax.f32 %v633, 0.0
  %v662 = vmax.f32 %v635, 0.0
  %v663 = vpack.c.bf16 %v638, %v637
  %v664 = vpack.c.bf16 %v640, %v639
  %v665 = vpack.c.bf16 %v642, %v641
  %v666 = vpack.c.bf16 %v644, %v643
  %v667 = vpack.c.bf16 %v646, %v645
  %v668 = vpack.c.bf16 %v648, %v647
  %v669 = vpack.c.bf16 %v650, %v649
  %v670 = vpack.c.bf16 %v652, %v651
  %v671 = vpack.c.bf16 %v654, %v653
  %v672 = vpack.c.bf16 %v656, %v655
  %v673 = vpack.c.bf16 %v658, %v657
  %v674 = vpack.c.bf16 %v660, %v659
  %v675 = vpack.c.bf16 %v662, %v661
  %v676 = vld [vmem:[%s4] sm:$0xff]
  %v677 = vld [vmem:[%s4 + $0x8] sm:$0xff]
  %v678 = vld [vmem:[%s4 + $0x10] sm:$0xff]
  %v679 = vld [vmem:[%s4 + $0x18] sm:$0xff]
  %v680 = vld [vmem:[%s4 + $0x20] sm:$0xff]
  %v681 = vld [vmem:[%s4 + $0x28] sm:$0xff]
  %v682 = vld [vmem:[%s4 + $0x30] sm:$0xff]
  %v683 = vld [vmem:[%s4 + $0x38] sm:$0xff]
  %v684 = vld [vmem:[%s4 + $0x40] sm:$0xff]
  %v685 = vld [vmem:[%s4 + $0x48] sm:$0xff]
  %v686 = vld [vmem:[%s4 + $0x50] sm:$0xff]
  %v687 = vld [vmem:[%s4 + $0x58] sm:$0xff]
  %v688 = vld [vmem:[%s4 + $0x60] sm:$0xff]
  %v689 = vld [vmem:[%s4 + $0x68] sm:$0xff]
  %v690 = vld [vmem:[%s4 + $0x70] sm:$0xff]
  %v691 = vld [vmem:[%s4 + $0x78] sm:$0xff]
  %v692 = vld [vmem:[%s5] sm:$0x3]
  %v694 = vperm.slane %v692, 0
  %v695 = vperm.slane %v692, 1
  %v714 = vunpack.c.l.b16 %v676
  %v715 = vunpack.c.h.b16 %v676
  %v716 = vunpack.c.l.b16 %v677
  %v717 = vunpack.c.h.b16 %v677
  %v718 = vunpack.c.l.b16 %v678
  %v719 = vunpack.c.h.b16 %v678
  %v720 = vunpack.c.l.b16 %v679
  %v721 = vunpack.c.h.b16 %v679
  %v722 = vunpack.c.l.b16 %v680
  %v723 = vunpack.c.h.b16 %v680
  %v724 = vunpack.c.l.b16 %v681
  %v725 = vunpack.c.h.b16 %v681
  %v726 = vunpack.c.l.b16 %v682
  %v727 = vunpack.c.h.b16 %v682
  %v728 = vunpack.c.l.b16 %v683
  %v729 = vunpack.c.h.b16 %v683
  %v730 = vunpack.c.l.b16 %v684
  %v731 = vunpack.c.h.b16 %v684
  %v732 = vunpack.c.l.b16 %v685
  %v733 = vunpack.c.h.b16 %v685
  %v734 = vunpack.c.l.b16 %v686
  %v735 = vunpack.c.h.b16 %v686
  %v736 = vunpack.c.l.b16 %v687
  %v737 = vunpack.c.h.b16 %v687
  %v738 = vunpack.c.l.b16 %v688
  %v739 = vunpack.c.h.b16 %v688
  %v740 = vunpack.c.l.b16 %v689
  %v741 = vunpack.c.h.b16 %v689
  %v742 = vunpack.c.l.b16 %v690
  %v743 = vunpack.c.h.b16 %v690
  %v744 = vunpack.c.l.b16 %v691
  %v745 = vunpack.c.h.b16 %v691
  %v746 = vpack.c.b16 %v716, %v714
  %v747 = vpack.c.b16 %v717, %v715
  %v748 = vpack.c.b16 %v720, %v718
  %v749 = vpack.c.b16 %v721, %v719
  %v750 = vpack.c.b16 %v724, %v722
  %v751 = vpack.c.b16 %v725, %v723
  %v752 = vpack.c.b16 %v728, %v726
  %v753 = vpack.c.b16 %v729, %v727
  %v754 = vpack.c.b16 %v732, %v730
  %v755 = vpack.c.b16 %v733, %v731
  %v756 = vpack.c.b16 %v736, %v734
  %v757 = vpack.c.b16 %v737, %v735
  %v758 = vpack.c.b16 %v740, %v738
  %v759 = vpack.c.b16 %v741, %v739
  %v760 = vpack.c.b16 %v744, %v742
  %v761 = vpack.c.b16 %v745, %v743
  %778 = vmatpush.bf16.msra.mxu0 %v760
  %779 = vmatpush.bf16.msra.mxu0 %v758
  %780 = vmatpush.bf16.msra.mxu0 %v756
  %781 = vmatpush.bf16.msra.mxu0 %v754
  %782 = vmatpush.bf16.msra.mxu0 %v752
  %783 = vmatpush.bf16.msra.mxu0 %v750
  %784 = vmatpush.bf16.msra.mxu0 %v748
  %785 = vmatpush.bf16.msra.mxu0 %v746
  %786 = vmatmul.bf16.gmra.mxu0 %v663
  %v787 = vpop.f32.mrf.mxu0
  %v788 = vadd.f32 %v694, %v787
  %v789 = vpop.f32.mrf.mxu0
  %v790 = vadd.f32 %v694, %v789
  %791 = vmatmul.bf16.gmra.mxu0 %v664
  %v792 = vpop.f32.mrf.mxu0
  %v793 = vadd.f32 %v694, %v792
  %v794 = vpop.f32.mrf.mxu0
  %v795 = vadd.f32 %v694, %v794
  %796 = vmatmul.bf16.gmra.mxu0 %v665
  %v797 = vpop.f32.mrf.mxu0
  %v798 = vadd.f32 %v694, %v797
  %v799 = vpop.f32.mrf.mxu0
  %v800 = vadd.f32 %v694, %v799
  %801 = vmatmul.bf16.gmra.mxu0 %v666
  %v802 = vpop.f32.mrf.mxu0
  %v803 = vadd.f32 %v694, %v802
  %v804 = vpop.f32.mrf.mxu0
  %v805 = vadd.f32 %v694, %v804
  %806 = vmatmul.bf16.gmra.mxu0 %v667
  %v807 = vpop.f32.mrf.mxu0
  %v808 = vadd.f32 %v694, %v807
  %v809 = vpop.f32.mrf.mxu0
  %v810 = vadd.f32 %v694, %v809
  %811 = vmatmul.bf16.gmra.mxu0 %v668
  %v812 = vpop.f32.mrf.mxu0
  %v813 = vadd.f32 %v694, %v812
  %v814 = vpop.f32.mrf.mxu0
  %v815 = vadd.f32 %v694, %v814
  %816 = vmatmul.bf16.gmra.mxu0 %v669
  %v817 = vpop.f32.mrf.mxu0
  %v818 = vadd.f32 %v694, %v817
  %v819 = vpop.f32.mrf.mxu0
  %v820 = vadd.f32 %v694, %v819
  %821 = vmatmul.bf16.gmra.mxu0 %v670
  %v822 = vpop.f32.mrf.mxu0
  %v823 = vadd.f32 %v694, %v822
  %v824 = vpop.f32.mrf.mxu0
  %v825 = vadd.f32 %v694, %v824
  %826 = vmatmul.bf16.gmra.mxu0 %v671
  %v827 = vpop.f32.mrf.mxu0
  %v828 = vadd.f32 %v694, %v827
  %v829 = vpop.f32.mrf.mxu0
  %v830 = vadd.f32 %v694, %v829
  %831 = vmatmul.bf16.gmra.mxu0 %v672
  %v832 = vpop.f32.mrf.mxu0
  %v833 = vadd.f32 %v694, %v832
  %v834 = vpop.f32.mrf.mxu0
  %v835 = vadd.f32 %v694, %v834
  %836 = vmatmul.bf16.gmra.mxu0 %v673
  %v837 = vpop.f32.mrf.mxu0
  %v838 = vadd.f32 %v694, %v837
  %v839 = vpop.f32.mrf.mxu0
  %v840 = vadd.f32 %v694, %v839
  %841 = vmatmul.bf16.gmra.mxu0 %v674
  %v842 = vpop.f32.mrf.mxu0
  %v843 = vadd.f32 %v694, %v842
  %v844 = vpop.f32.mrf.mxu0
  %v845 = vadd.f32 %v694, %v844
  %846 = vmatmul.bf16.gmra.mxu0 %v675
  %v847 = vpop.f32.mrf.mxu0
  %v848 = vadd.f32 %v694, %v847
  %v849 = vpop.f32.mrf.mxu0
  %v850 = vadd.f32 %v694, %v849
  %851 = vdwg.mxu0
  %852 = vmatpush.bf16.msra.mxu0 %v761
  %853 = vmatpush.bf16.msra.mxu0 %v759
  %854 = vmatpush.bf16.msra.mxu0 %v757
  %855 = vmatpush.bf16.msra.mxu0 %v755
  %856 = vmatpush.bf16.msra.mxu0 %v753
  %857 = vmatpush.bf16.msra.mxu0 %v751
  %858 = vmatpush.bf16.msra.mxu0 %v749
  %859 = vmatpush.bf16.msra.mxu0 %v747
  %860 = vmatmul.bf16.gmra.mxu0 %v663
  %v861 = vpop.f32.mrf.mxu0
  %v862 = vadd.f32 %v695, %v861
  %v863 = vpop.f32.mrf.mxu0
  %v864 = vadd.f32 %v695, %v863
  %865 = vmatmul.bf16.gmra.mxu0 %v664
  %v866 = vpop.f32.mrf.mxu0
  %v867 = vadd.f32 %v695, %v866
  %v868 = vpop.f32.mrf.mxu0
  %v869 = vadd.f32 %v695, %v868
  %870 = vmatmul.bf16.gmra.mxu0 %v665
  %v871 = vpop.f32.mrf.mxu0
  %v872 = vadd.f32 %v695, %v871
  %v873 = vpop.f32.mrf.mxu0
  %v874 = vadd.f32 %v695, %v873
  %875 = vmatmul.bf16.gmra.mxu0 %v666
  %v876 = vpop.f32.mrf.mxu0
  %v877 = vadd.f32 %v695, %v876
  %v878 = vpop.f32.mrf.mxu0
  %v879 = vadd.f32 %v695, %v878
  %880 = vmatmul.bf16.gmra.mxu0 %v667
  %v881 = vpop.f32.mrf.mxu0
  %v882 = vadd.f32 %v695, %v881
  %v883 = vpop.f32.mrf.mxu0
  %v884 = vadd.f32 %v695, %v883
  %885 = vmatmul.bf16.gmra.mxu0 %v668
  %v886 = vpop.f32.mrf.mxu0
  %v887 = vadd.f32 %v695, %v886
  %v888 = vpop.f32.mrf.mxu0
  %v889 = vadd.f32 %v695, %v888
  %890 = vmatmul.bf16.gmra.mxu0 %v669
  %v891 = vpop.f32.mrf.mxu0
  %v892 = vadd.f32 %v695, %v891
  %v893 = vpop.f32.mrf.mxu0
  %v894 = vadd.f32 %v695, %v893
  %895 = vmatmul.bf16.gmra.mxu0 %v670
  %v896 = vpop.f32.mrf.mxu0
  %v897 = vadd.f32 %v695, %v896
  %v898 = vpop.f32.mrf.mxu0
  %v899 = vadd.f32 %v695, %v898
  %900 = vmatmul.bf16.gmra.mxu0 %v671
  %v901 = vpop.f32.mrf.mxu0
  %v902 = vadd.f32 %v695, %v901
  %v903 = vpop.f32.mrf.mxu0
  %v904 = vadd.f32 %v695, %v903
  %905 = vmatmul.bf16.gmra.mxu0 %v672
  %v906 = vpop.f32.mrf.mxu0
  %v907 = vadd.f32 %v695, %v906
  %v908 = vpop.f32.mrf.mxu0
  %v909 = vadd.f32 %v695, %v908
  %910 = vmatmul.bf16.gmra.mxu0 %v673
  %v911 = vpop.f32.mrf.mxu0
  %v912 = vadd.f32 %v695, %v911
  %v913 = vpop.f32.mrf.mxu0
  %v914 = vadd.f32 %v695, %v913
  %915 = vmatmul.bf16.gmra.mxu0 %v674
  %v916 = vpop.f32.mrf.mxu0
  %v917 = vadd.f32 %v695, %v916
  %v918 = vpop.f32.mrf.mxu0
  %v919 = vadd.f32 %v695, %v918
  %920 = vmatmul.bf16.gmra.mxu0 %v675
  %v921 = vpop.f32.mrf.mxu0
  %v922 = vadd.f32 %v695, %v921
  %v923 = vpop.f32.mrf.mxu0
  %v924 = vadd.f32 %v695, %v923
  %925 = vdwg.mxu0
  %v926 = vmul.f32 %v862, 0.5
  %v927 = vmul.f32 %v864, 0.5
  %v928 = vmul.f32 %v867, 0.5
  %v929 = vmul.f32 %v869, 0.5
  %v930 = vmul.f32 %v872, 0.5
  %v931 = vmul.f32 %v874, 0.5
  %v932 = vmul.f32 %v877, 0.5
  %v933 = vmul.f32 %v879, 0.5
  %v934 = vmul.f32 %v882, 0.5
  %v935 = vmul.f32 %v884, 0.5
  %v936 = vmul.f32 %v887, 0.5
  %v937 = vmul.f32 %v889, 0.5
  %v938 = vmul.f32 %v892, 0.5
  %v939 = vmul.f32 %v894, 0.5
  %v940 = vmul.f32 %v897, 0.5
  %v941 = vmul.f32 %v899, 0.5
  %v942 = vmul.f32 %v902, 0.5
  %v943 = vmul.f32 %v904, 0.5
  %v944 = vmul.f32 %v907, 0.5
  %v945 = vmul.f32 %v909, 0.5
  %v946 = vmul.f32 %v912, 0.5
  %v947 = vmul.f32 %v914, 0.5
  %v948 = vmul.f32 %v917, 0.5
  %v949 = vmul.f32 %v919, 0.5
  %v950 = vmul.f32 %v922, 0.5
  %v951 = vmul.f32 %v924, 0.5
  %v952 = vmul.f32 %v926, 1.442695
  %v953 = vpow.pop %v952
  %v954 = vmul.f32 %v927, 1.442695
  %v955 = vpow.pop %v954
  %v956 = vmul.f32 %v928, 1.442695
  %v957 = vpow.pop %v956
  %v958 = vmul.f32 %v929, 1.442695
  %v959 = vpow.pop %v958
  %v960 = vmul.f32 %v930, 1.442695
  %v961 = vpow.pop %v960
  %v962 = vmul.f32 %v931, 1.442695
  %v963 = vpow.pop %v962
  %v964 = vmul.f32 %v932, 1.442695
  %v965 = vpow.pop %v964
  %v966 = vmul.f32 %v933, 1.442695
  %v967 = vpow.pop %v966
  %v968 = vmul.f32 %v934, 1.442695
  %v969 = vpow.pop %v968
  %v970 = vmul.f32 %v935, 1.442695
  %v971 = vpow.pop %v970
  %v972 = vmul.f32 %v936, 1.442695
  %v973 = vpow.pop %v972
  %v974 = vmul.f32 %v937, 1.442695
  %v975 = vpow.pop %v974
  %v976 = vmul.f32 %v938, 1.442695
  %v977 = vpow.pop %v976
  %v978 = vmul.f32 %v939, 1.442695
  %v979 = vpow.pop %v978
  %v980 = vmul.f32 %v940, 1.442695
  %v981 = vpow.pop %v980
  %v982 = vmul.f32 %v941, 1.442695
  %v983 = vpow.pop %v982
  %v984 = vmul.f32 %v942, 1.442695
  %v985 = vpow.pop %v984
  %v986 = vmul.f32 %v943, 1.442695
  %v987 = vpow.pop %v986
  %v988 = vmul.f32 %v944, 1.442695
  %v989 = vpow.pop %v988
  %v990 = vmul.f32 %v945, 1.442695
  %v991 = vpow.pop %v990
  %v992 = vmul.f32 %v946, 1.442695
  %v993 = vpow.pop %v992
  %v994 = vmul.f32 %v947, 1.442695
  %v995 = vpow.pop %v994
  %v996 = vmul.f32 %v948, 1.442695
  %v997 = vpow.pop %v996
  %v998 = vmul.f32 %v949, 1.442695
  %v999 = vpow.pop %v998
  %v1000 = vmul.f32 %v950, 1.442695
  %v1001 = vpow.pop %v1000
  %v1002 = vmul.f32 %v951, 1.442695
  %v1003 = vpow.pop %v1002
  %v1004 = vld [vmem:[%s1] sm:$0xff]
  %v1005 = vld [vmem:[%s1 + $0x8] sm:$0xff]
  %v1006 = vld [vmem:[%s1 + $0x10] sm:$0xff]
  %v1007 = vld [vmem:[%s1 + $0x18] sm:$0xff]
  %v1008 = vld [vmem:[%s1 + $0x20] sm:$0xff]
  %v1009 = vld [vmem:[%s1 + $0x28] sm:$0xff]
  %v1010 = vld [vmem:[%s1 + $0x30] sm:$0xff]
  %v1011 = vld [vmem:[%s1 + $0x38] sm:$0xff]
  %v1012 = vld [vmem:[%s1 + $0x40] sm:$0xff]
  %v1013 = vld [vmem:[%s1 + $0x48] sm:$0xff]
  %v1014 = vld [vmem:[%s1 + $0x50] sm:$0xff]
  %v1015 = vld [vmem:[%s1 + $0x58] sm:$0xff]
  %v1016 = vld [vmem:[%s1 + $0x60] sm:$0xff]
  %v1017 = vld [vmem:[%s1 + $0x68] sm:$0xff]
  %v1018 = vld [vmem:[%s1 + $0x70] sm:$0xff]
  %v1019 = vld [vmem:[%s1 + $0x78] sm:$0xff]
  %v1020 = vld [vmem:[%s1 + $0x80] sm:$0xff]
  %v1021 = vld [vmem:[%s1 + $0x88] sm:$0xff]
  %v1022 = vld [vmem:[%s1 + $0x90] sm:$0xff]
  %v1023 = vld [vmem:[%s1 + $0x98] sm:$0xff]
  %v1024 = vld [vmem:[%s1 + $0xa0] sm:$0xff]
  %v1025 = vld [vmem:[%s1 + $0xa8] sm:$0xff]
  %v1026 = vld [vmem:[%s1 + $0xb0] sm:$0xff]
  %v1027 = vld [vmem:[%s1 + $0xb8] sm:$0xff]
  %v1028 = vld [vmem:[%s1 + $0xc0] sm:$0xff]
  %v1029 = vld [vmem:[%s1 + $0xc8] sm:$0xff]
  %v1030 = vmul.f32 %v1004, %v953
  %v1031 = vmul.f32 %v1005, %v955
  %v1032 = vmul.f32 %v1006, %v957
  %v1033 = vmul.f32 %v1007, %v959
  %v1034 = vmul.f32 %v1008, %v961
  %v1035 = vmul.f32 %v1009, %v963
  %v1036 = vmul.f32 %v1010, %v965
  %v1037 = vmul.f32 %v1011, %v967
  %v1038 = vmul.f32 %v1012, %v969
  %v1039 = vmul.f32 %v1013, %v971
  %v1040 = vmul.f32 %v1014, %v973
  %v1041 = vmul.f32 %v1015, %v975
  %v1042 = vmul.f32 %v1016, %v977
  %v1043 = vmul.f32 %v1017, %v979
  %v1044 = vmul.f32 %v1018, %v981
  %v1045 = vmul.f32 %v1019, %v983
  %v1046 = vmul.f32 %v1020, %v985
  %v1047 = vmul.f32 %v1021, %v987
  %v1048 = vmul.f32 %v1022, %v989
  %v1049 = vmul.f32 %v1023, %v991
  %v1050 = vmul.f32 %v1024, %v993
  %v1051 = vmul.f32 %v1025, %v995
  %v1052 = vmul.f32 %v1026, %v997
  %v1053 = vmul.f32 %v1027, %v999
  %v1054 = vmul.f32 %v1028, %v1001
  %v1055 = vmul.f32 %v1029, %v1003
  %v1056 = vadd.f32 %v788, %v1030
  %v1057 = vadd.f32 %v790, %v1031
  %v1058 = vadd.f32 %v793, %v1032
  %v1059 = vadd.f32 %v795, %v1033
  %v1060 = vadd.f32 %v798, %v1034
  %v1061 = vadd.f32 %v800, %v1035
  %v1062 = vadd.f32 %v803, %v1036
  %v1063 = vadd.f32 %v805, %v1037
  %v1064 = vadd.f32 %v808, %v1038
  %v1065 = vadd.f32 %v810, %v1039
  %v1066 = vadd.f32 %v813, %v1040
  %v1067 = vadd.f32 %v815, %v1041
  %v1068 = vadd.f32 %v818, %v1042
  %v1069 = vadd.f32 %v820, %v1043
  %v1070 = vadd.f32 %v823, %v1044
  %v1071 = vadd.f32 %v825, %v1045
  %v1072 = vadd.f32 %v828, %v1046
  %v1073 = vadd.f32 %v830, %v1047
  %v1074 = vadd.f32 %v833, %v1048
  %v1075 = vadd.f32 %v835, %v1049
  %v1076 = vadd.f32 %v838, %v1050
  %v1077 = vadd.f32 %v840, %v1051
  %v1078 = vadd.f32 %v843, %v1052
  %v1079 = vadd.f32 %v845, %v1053
  %v1080 = vadd.f32 %v848, %v1054
  %v1081 = vadd.f32 %v850, %v1055
  %s1082 = scalar_lea.vmem %s2, 192
  %v1083 = vld [vmem:[%s1082] sm:$0xf]
  %v1084 = vld [vmem:[%s1082 + $0x4] sm:$0xf]
  %v1085 = vld [vmem:[%s1082 + $0x8] sm:$0xf]
  %v1086 = vld [vmem:[%s1082 + $0xc] sm:$0xf]
  %v1087 = vld [vmem:[%s1082 + $0x10] sm:$0xf]
  %v1088 = vld [vmem:[%s1082 + $0x14] sm:$0xf]
  %v1089 = vld [vmem:[%s1082 + $0x18] sm:$0xf]
  %v1090 = vld [vmem:[%s1082 + $0x1c] sm:$0xf]
  %v1091 = vld [vmem:[%s1082 + $0x20] sm:$0xf]
  %v1092 = vld [vmem:[%s1082 + $0x24] sm:$0xf]
  %v1093 = vld [vmem:[%s1082 + $0x28] sm:$0xf]
  %v1094 = vld [vmem:[%s1082 + $0x2c] sm:$0xf]
  %v1095 = vld [vmem:[%s1082 + $0x30] sm:$0xf]
  %v1096 = vld [vmem:[%s1082 + $0x34] sm:$0xf]
  %v1097 = vld [vmem:[%s1082 + $0x38] sm:$0xf]
  %v1098 = vld [vmem:[%s1082 + $0x3c] sm:$0xf]
  %s1099 = scalar_lea.vmem %s3, 3
  %v1100 = vld [vmem:[%s1099] sm:$0x1]
  %v1101 = vpack.c.bf16 %v1057, %v1056
  %v1102 = vpack.c.bf16 %v1059, %v1058
  %v1103 = vpack.c.bf16 %v1061, %v1060
  %v1104 = vpack.c.bf16 %v1063, %v1062
  %v1105 = vpack.c.bf16 %v1065, %v1064
  %v1106 = vpack.c.bf16 %v1067, %v1066
  %v1107 = vpack.c.bf16 %v1069, %v1068
  %v1108 = vpack.c.bf16 %v1071, %v1070
  %v1109 = vpack.c.bf16 %v1073, %v1072
  %v1110 = vpack.c.bf16 %v1075, %v1074
  %v1111 = vpack.c.bf16 %v1077, %v1076
  %v1112 = vpack.c.bf16 %v1079, %v1078
  %v1113 = vpack.c.bf16 %v1081, %v1080
  %v1115 = vperm.slane %v1100, 0
  %v1133 = vunpack.c.l.b16 %v1083
  %v1134 = vunpack.c.l.b16 %v1084
  %v1135 = vunpack.c.l.b16 %v1085
  %v1136 = vunpack.c.l.b16 %v1086
  %v1137 = vunpack.c.l.b16 %v1087
  %v1138 = vunpack.c.l.b16 %v1088
  %v1139 = vunpack.c.l.b16 %v1089
  %v1140 = vunpack.c.l.b16 %v1090
  %v1141 = vunpack.c.l.b16 %v1091
  %v1142 = vunpack.c.l.b16 %v1092
  %v1143 = vunpack.c.l.b16 %v1093
  %v1144 = vunpack.c.l.b16 %v1094
  %v1145 = vunpack.c.l.b16 %v1095
  %v1146 = vunpack.c.l.b16 %v1096
  %v1147 = vunpack.c.l.b16 %v1097
  %v1148 = vunpack.c.l.b16 %v1098
  %v1149 = vpack.c.b16 %v1134, %v1133
  %v1150 = vpack.c.b16 %v1136, %v1135
  %v1151 = vpack.c.b16 %v1138, %v1137
  %v1152 = vpack.c.b16 %v1140, %v1139
  %v1153 = vpack.c.b16 %v1142, %v1141
  %v1154 = vpack.c.b16 %v1144, %v1143
  %v1155 = vpack.c.b16 %v1146, %v1145
  %v1156 = vpack.c.b16 %v1148, %v1147
  %1165 = vmatpush.bf16.msra.mxu0 %v1156
  %1166 = vmatpush.bf16.msra.mxu0 %v1155
  %1167 = vmatpush.bf16.msra.mxu0 %v1154
  %1168 = vmatpush.bf16.msra.mxu0 %v1153
  %1169 = vmatpush.bf16.msra.mxu0 %v1152
  %1170 = vmatpush.bf16.msra.mxu0 %v1151
  %1171 = vmatpush.bf16.msra.mxu0 %v1150
  %1172 = vmatpush.bf16.msra.mxu0 %v1149
  %1173 = vmatmul.bf16.gmra.mxu0 %v1101
  %v1174 = vpop.f32.mrf.mxu0
  %v1175 = vadd.f32 %v1115, %v1174
  %v1176 = vpop.f32.mrf.mxu0
  %v1177 = vadd.f32 %v1115, %v1176
  %1178 = vmatmul.bf16.gmra.mxu0 %v1102
  %v1179 = vpop.f32.mrf.mxu0
  %v1180 = vadd.f32 %v1115, %v1179
  %v1181 = vpop.f32.mrf.mxu0
  %v1182 = vadd.f32 %v1115, %v1181
  %1183 = vmatmul.bf16.gmra.mxu0 %v1103
  %v1184 = vpop.f32.mrf.mxu0
  %v1185 = vadd.f32 %v1115, %v1184
  %v1186 = vpop.f32.mrf.mxu0
  %v1187 = vadd.f32 %v1115, %v1186
  %1188 = vmatmul.bf16.gmra.mxu0 %v1104
  %v1189 = vpop.f32.mrf.mxu0
  %v1190 = vadd.f32 %v1115, %v1189
  %v1191 = vpop.f32.mrf.mxu0
  %v1192 = vadd.f32 %v1115, %v1191
  %1193 = vmatmul.bf16.gmra.mxu0 %v1105
  %v1194 = vpop.f32.mrf.mxu0
  %v1195 = vadd.f32 %v1115, %v1194
  %v1196 = vpop.f32.mrf.mxu0
  %v1197 = vadd.f32 %v1115, %v1196
  %1198 = vmatmul.bf16.gmra.mxu0 %v1106
  %v1199 = vpop.f32.mrf.mxu0
  %v1200 = vadd.f32 %v1115, %v1199
  %v1201 = vpop.f32.mrf.mxu0
  %v1202 = vadd.f32 %v1115, %v1201
  %1203 = vmatmul.bf16.gmra.mxu0 %v1107
  %v1204 = vpop.f32.mrf.mxu0
  %v1205 = vadd.f32 %v1115, %v1204
  %v1206 = vpop.f32.mrf.mxu0
  %v1207 = vadd.f32 %v1115, %v1206
  %1208 = vmatmul.bf16.gmra.mxu0 %v1108
  %v1209 = vpop.f32.mrf.mxu0
  %v1210 = vadd.f32 %v1115, %v1209
  %v1211 = vpop.f32.mrf.mxu0
  %v1212 = vadd.f32 %v1115, %v1211
  %1213 = vmatmul.bf16.gmra.mxu0 %v1109
  %v1214 = vpop.f32.mrf.mxu0
  %v1215 = vadd.f32 %v1115, %v1214
  %v1216 = vpop.f32.mrf.mxu0
  %v1217 = vadd.f32 %v1115, %v1216
  %1218 = vmatmul.bf16.gmra.mxu0 %v1110
  %v1219 = vpop.f32.mrf.mxu0
  %v1220 = vadd.f32 %v1115, %v1219
  %v1221 = vpop.f32.mrf.mxu0
  %v1222 = vadd.f32 %v1115, %v1221
  %1223 = vmatmul.bf16.gmra.mxu0 %v1111
  %v1224 = vpop.f32.mrf.mxu0
  %v1225 = vadd.f32 %v1115, %v1224
  %v1226 = vpop.f32.mrf.mxu0
  %v1227 = vadd.f32 %v1115, %v1226
  %1228 = vmatmul.bf16.gmra.mxu0 %v1112
  %v1229 = vpop.f32.mrf.mxu0
  %v1230 = vadd.f32 %v1115, %v1229
  %v1231 = vpop.f32.mrf.mxu0
  %v1232 = vadd.f32 %v1115, %v1231
  %1233 = vmatmul.bf16.gmra.mxu0 %v1113
  %v1234 = vpop.f32.mrf.mxu0
  %v1235 = vadd.f32 %v1115, %v1234
  %v1236 = vpop.f32.mrf.mxu0
  %v1237 = vadd.f32 %v1115, %v1236
  %1238 = vdwg.mxu0
  %v1239 = vmax.f32 %v1175, 0.0
  %v1240 = vmax.f32 %v1177, 0.0
  %v1241 = vmax.f32 %v1180, 0.0
  %v1242 = vmax.f32 %v1182, 0.0
  %v1243 = vmax.f32 %v1185, 0.0
  %v1244 = vmax.f32 %v1187, 0.0
  %v1245 = vmax.f32 %v1190, 0.0
  %v1246 = vmax.f32 %v1192, 0.0
  %v1247 = vmax.f32 %v1195, 0.0
  %v1248 = vmax.f32 %v1197, 0.0
  %v1249 = vmax.f32 %v1200, 0.0
  %v1250 = vmax.f32 %v1202, 0.0
  %v1251 = vmax.f32 %v1205, 0.0
  %v1252 = vmax.f32 %v1207, 0.0
  %v1253 = vmax.f32 %v1210, 0.0
  %v1254 = vmax.f32 %v1212, 0.0
  %v1255 = vmax.f32 %v1215, 0.0
  %v1256 = vmax.f32 %v1217, 0.0
  %v1257 = vmax.f32 %v1220, 0.0
  %v1258 = vmax.f32 %v1222, 0.0
  %v1259 = vmax.f32 %v1225, 0.0
  %v1260 = vmax.f32 %v1227, 0.0
  %v1261 = vmax.f32 %v1230, 0.0
  %v1262 = vmax.f32 %v1232, 0.0
  %v1263 = vmax.f32 %v1235, 0.0
  %v1264 = vmax.f32 %v1237, 0.0
  %s1265 = scalar_lea.vmem %s2, 256
  %v1266 = vld [vmem:[%s1265] sm:$0xf]
  %v1267 = vld [vmem:[%s1265 + $0x4] sm:$0xf]
  %v1268 = vld [vmem:[%s1265 + $0x8] sm:$0xf]
  %v1269 = vld [vmem:[%s1265 + $0xc] sm:$0xf]
  %v1270 = vld [vmem:[%s1265 + $0x10] sm:$0xf]
  %v1271 = vld [vmem:[%s1265 + $0x14] sm:$0xf]
  %v1272 = vld [vmem:[%s1265 + $0x18] sm:$0xf]
  %v1273 = vld [vmem:[%s1265 + $0x1c] sm:$0xf]
  %v1274 = vld [vmem:[%s1265 + $0x20] sm:$0xf]
  %v1275 = vld [vmem:[%s1265 + $0x24] sm:$0xf]
  %v1276 = vld [vmem:[%s1265 + $0x28] sm:$0xf]
  %v1277 = vld [vmem:[%s1265 + $0x2c] sm:$0xf]
  %v1278 = vld [vmem:[%s1265 + $0x30] sm:$0xf]
  %v1279 = vld [vmem:[%s1265 + $0x34] sm:$0xf]
  %v1280 = vld [vmem:[%s1265 + $0x38] sm:$0xf]
  %v1281 = vld [vmem:[%s1265 + $0x3c] sm:$0xf]
  %s1282 = scalar_lea.vmem %s3, 4
  %v1283 = vld [vmem:[%s1282] sm:$0x1]
  %v1284 = vpack.c.bf16 %v1240, %v1239
  %v1285 = vpack.c.bf16 %v1242, %v1241
  %v1286 = vpack.c.bf16 %v1244, %v1243
  %v1287 = vpack.c.bf16 %v1246, %v1245
  %v1288 = vpack.c.bf16 %v1248, %v1247
  %v1289 = vpack.c.bf16 %v1250, %v1249
  %v1290 = vpack.c.bf16 %v1252, %v1251
  %v1291 = vpack.c.bf16 %v1254, %v1253
  %v1292 = vpack.c.bf16 %v1256, %v1255
  %v1293 = vpack.c.bf16 %v1258, %v1257
  %v1294 = vpack.c.bf16 %v1260, %v1259
  %v1295 = vpack.c.bf16 %v1262, %v1261
  %v1296 = vpack.c.bf16 %v1264, %v1263
  %v1298 = vperm.slane %v1283, 0
  %v1316 = vunpack.c.l.b16 %v1266
  %v1317 = vunpack.c.l.b16 %v1267
  %v1318 = vunpack.c.l.b16 %v1268
  %v1319 = vunpack.c.l.b16 %v1269
  %v1320 = vunpack.c.l.b16 %v1270
  %v1321 = vunpack.c.l.b16 %v1271
  %v1322 = vunpack.c.l.b16 %v1272
  %v1323 = vunpack.c.l.b16 %v1273
  %v1324 = vunpack.c.l.b16 %v1274
  %v1325 = vunpack.c.l.b16 %v1275
  %v1326 = vunpack.c.l.b16 %v1276
  %v1327 = vunpack.c.l.b16 %v1277
  %v1328 = vunpack.c.l.b16 %v1278
  %v1329 = vunpack.c.l.b16 %v1279
  %v1330 = vunpack.c.l.b16 %v1280
  %v1331 = vunpack.c.l.b16 %v1281
  %v1332 = vpack.c.b16 %v1317, %v1316
  %v1333 = vpack.c.b16 %v1319, %v1318
  %v1334 = vpack.c.b16 %v1321, %v1320
  %v1335 = vpack.c.b16 %v1323, %v1322
  %v1336 = vpack.c.b16 %v1325, %v1324
  %v1337 = vpack.c.b16 %v1327, %v1326
  %v1338 = vpack.c.b16 %v1329, %v1328
  %v1339 = vpack.c.b16 %v1331, %v1330
  %1348 = vmatpush.bf16.msra.mxu0 %v1339
  %1349 = vmatpush.bf16.msra.mxu0 %v1338
  %1350 = vmatpush.bf16.msra.mxu0 %v1337
  %1351 = vmatpush.bf16.msra.mxu0 %v1336
  %1352 = vmatpush.bf16.msra.mxu0 %v1335
  %1353 = vmatpush.bf16.msra.mxu0 %v1334
  %1354 = vmatpush.bf16.msra.mxu0 %v1333
  %1355 = vmatpush.bf16.msra.mxu0 %v1332
  %1356 = vmatmul.bf16.gmra.mxu0 %v1284
  %v1357 = vpop.f32.mrf.mxu0
  %v1358 = vadd.f32 %v1298, %v1357
  %v1359 = vpop.f32.mrf.mxu0
  %v1360 = vadd.f32 %v1298, %v1359
  %1361 = vmatmul.bf16.gmra.mxu0 %v1285
  %v1362 = vpop.f32.mrf.mxu0
  %v1363 = vadd.f32 %v1298, %v1362
  %v1364 = vpop.f32.mrf.mxu0
  %v1365 = vadd.f32 %v1298, %v1364
  %1366 = vmatmul.bf16.gmra.mxu0 %v1286
  %v1367 = vpop.f32.mrf.mxu0
  %v1368 = vadd.f32 %v1298, %v1367
  %v1369 = vpop.f32.mrf.mxu0
  %v1370 = vadd.f32 %v1298, %v1369
  %1371 = vmatmul.bf16.gmra.mxu0 %v1287
  %v1372 = vpop.f32.mrf.mxu0
  %v1373 = vadd.f32 %v1298, %v1372
  %v1374 = vpop.f32.mrf.mxu0
  %v1375 = vadd.f32 %v1298, %v1374
  %1376 = vmatmul.bf16.gmra.mxu0 %v1288
  %v1377 = vpop.f32.mrf.mxu0
  %v1378 = vadd.f32 %v1298, %v1377
  %v1379 = vpop.f32.mrf.mxu0
  %v1380 = vadd.f32 %v1298, %v1379
  %1381 = vmatmul.bf16.gmra.mxu0 %v1289
  %v1382 = vpop.f32.mrf.mxu0
  %v1383 = vadd.f32 %v1298, %v1382
  %v1384 = vpop.f32.mrf.mxu0
  %v1385 = vadd.f32 %v1298, %v1384
  %1386 = vmatmul.bf16.gmra.mxu0 %v1290
  %v1387 = vpop.f32.mrf.mxu0
  %v1388 = vadd.f32 %v1298, %v1387
  %v1389 = vpop.f32.mrf.mxu0
  %v1390 = vadd.f32 %v1298, %v1389
  %1391 = vmatmul.bf16.gmra.mxu0 %v1291
  %v1392 = vpop.f32.mrf.mxu0
  %v1393 = vadd.f32 %v1298, %v1392
  %v1394 = vpop.f32.mrf.mxu0
  %v1395 = vadd.f32 %v1298, %v1394
  %1396 = vmatmul.bf16.gmra.mxu0 %v1292
  %v1397 = vpop.f32.mrf.mxu0
  %v1398 = vadd.f32 %v1298, %v1397
  %v1399 = vpop.f32.mrf.mxu0
  %v1400 = vadd.f32 %v1298, %v1399
  %1401 = vmatmul.bf16.gmra.mxu0 %v1293
  %v1402 = vpop.f32.mrf.mxu0
  %v1403 = vadd.f32 %v1298, %v1402
  %v1404 = vpop.f32.mrf.mxu0
  %v1405 = vadd.f32 %v1298, %v1404
  %1406 = vmatmul.bf16.gmra.mxu0 %v1294
  %v1407 = vpop.f32.mrf.mxu0
  %v1408 = vadd.f32 %v1298, %v1407
  %v1409 = vpop.f32.mrf.mxu0
  %v1410 = vadd.f32 %v1298, %v1409
  %1411 = vmatmul.bf16.gmra.mxu0 %v1295
  %v1412 = vpop.f32.mrf.mxu0
  %v1413 = vadd.f32 %v1298, %v1412
  %v1414 = vpop.f32.mrf.mxu0
  %v1415 = vadd.f32 %v1298, %v1414
  %1416 = vmatmul.bf16.gmra.mxu0 %v1296
  %v1417 = vpop.f32.mrf.mxu0
  %v1418 = vadd.f32 %v1298, %v1417
  %v1419 = vpop.f32.mrf.mxu0
  %v1420 = vadd.f32 %v1298, %v1419
  %1421 = vdwg.mxu0
  %v1422 = vmax.f32 %v1358, 0.0
  %v1423 = vmax.f32 %v1360, 0.0
  %v1424 = vmax.f32 %v1363, 0.0
  %v1425 = vmax.f32 %v1365, 0.0
  %v1426 = vmax.f32 %v1368, 0.0
  %v1427 = vmax.f32 %v1370, 0.0
  %v1428 = vmax.f32 %v1373, 0.0
  %v1429 = vmax.f32 %v1375, 0.0
  %v1430 = vmax.f32 %v1378, 0.0
  %v1431 = vmax.f32 %v1380, 0.0
  %v1432 = vmax.f32 %v1383, 0.0
  %v1433 = vmax.f32 %v1385, 0.0
  %v1434 = vmax.f32 %v1388, 0.0
  %v1435 = vmax.f32 %v1390, 0.0
  %v1436 = vmax.f32 %v1393, 0.0
  %v1437 = vmax.f32 %v1395, 0.0
  %v1438 = vmax.f32 %v1398, 0.0
  %v1439 = vmax.f32 %v1400, 0.0
  %v1440 = vmax.f32 %v1403, 0.0
  %v1441 = vmax.f32 %v1405, 0.0
  %v1442 = vmax.f32 %v1408, 0.0
  %v1443 = vmax.f32 %v1410, 0.0
  %v1444 = vmax.f32 %v1413, 0.0
  %v1445 = vmax.f32 %v1415, 0.0
  %v1446 = vmax.f32 %v1418, 0.0
  %v1447 = vmax.f32 %v1420, 0.0
  %s1448 = scalar_lea.vmem %s2, 320
  %v1449 = vld [vmem:[%s1448] sm:$0xf]
  %v1450 = vld [vmem:[%s1448 + $0x4] sm:$0xf]
  %v1451 = vld [vmem:[%s1448 + $0x8] sm:$0xf]
  %v1452 = vld [vmem:[%s1448 + $0xc] sm:$0xf]
  %v1453 = vld [vmem:[%s1448 + $0x10] sm:$0xf]
  %v1454 = vld [vmem:[%s1448 + $0x14] sm:$0xf]
  %v1455 = vld [vmem:[%s1448 + $0x18] sm:$0xf]
  %v1456 = vld [vmem:[%s1448 + $0x1c] sm:$0xf]
  %v1457 = vld [vmem:[%s1448 + $0x20] sm:$0xf]
  %v1458 = vld [vmem:[%s1448 + $0x24] sm:$0xf]
  %v1459 = vld [vmem:[%s1448 + $0x28] sm:$0xf]
  %v1460 = vld [vmem:[%s1448 + $0x2c] sm:$0xf]
  %v1461 = vld [vmem:[%s1448 + $0x30] sm:$0xf]
  %v1462 = vld [vmem:[%s1448 + $0x34] sm:$0xf]
  %v1463 = vld [vmem:[%s1448 + $0x38] sm:$0xf]
  %v1464 = vld [vmem:[%s1448 + $0x3c] sm:$0xf]
  %s1465 = scalar_lea.vmem %s3, 5
  %v1466 = vld [vmem:[%s1465] sm:$0x1]
  %v1467 = vpack.c.bf16 %v1423, %v1422
  %v1468 = vpack.c.bf16 %v1425, %v1424
  %v1469 = vpack.c.bf16 %v1427, %v1426
  %v1470 = vpack.c.bf16 %v1429, %v1428
  %v1471 = vpack.c.bf16 %v1431, %v1430
  %v1472 = vpack.c.bf16 %v1433, %v1432
  %v1473 = vpack.c.bf16 %v1435, %v1434
  %v1474 = vpack.c.bf16 %v1437, %v1436
  %v1475 = vpack.c.bf16 %v1439, %v1438
  %v1476 = vpack.c.bf16 %v1441, %v1440
  %v1477 = vpack.c.bf16 %v1443, %v1442
  %v1478 = vpack.c.bf16 %v1445, %v1444
  %v1479 = vpack.c.bf16 %v1447, %v1446
  %v1481 = vperm.slane %v1466, 0
  %v1499 = vunpack.c.l.b16 %v1449
  %v1500 = vunpack.c.l.b16 %v1450
  %v1501 = vunpack.c.l.b16 %v1451
  %v1502 = vunpack.c.l.b16 %v1452
  %v1503 = vunpack.c.l.b16 %v1453
  %v1504 = vunpack.c.l.b16 %v1454
  %v1505 = vunpack.c.l.b16 %v1455
  %v1506 = vunpack.c.l.b16 %v1456
  %v1507 = vunpack.c.l.b16 %v1457
  %v1508 = vunpack.c.l.b16 %v1458
  %v1509 = vunpack.c.l.b16 %v1459
  %v1510 = vunpack.c.l.b16 %v1460
  %v1511 = vunpack.c.l.b16 %v1461
  %v1512 = vunpack.c.l.b16 %v1462
  %v1513 = vunpack.c.l.b16 %v1463
  %v1514 = vunpack.c.l.b16 %v1464
  %v1515 = vpack.c.b16 %v1500, %v1499
  %v1516 = vpack.c.b16 %v1502, %v1501
  %v1517 = vpack.c.b16 %v1504, %v1503
  %v1518 = vpack.c.b16 %v1506, %v1505
  %v1519 = vpack.c.b16 %v1508, %v1507
  %v1520 = vpack.c.b16 %v1510, %v1509
  %v1521 = vpack.c.b16 %v1512, %v1511
  %v1522 = vpack.c.b16 %v1514, %v1513
  %1531 = vmatpush.bf16.msra.mxu0 %v1522
  %1532 = vmatpush.bf16.msra.mxu0 %v1521
  %1533 = vmatpush.bf16.msra.mxu0 %v1520
  %1534 = vmatpush.bf16.msra.mxu0 %v1519
  %1535 = vmatpush.bf16.msra.mxu0 %v1518
  %1536 = vmatpush.bf16.msra.mxu0 %v1517
  %1537 = vmatpush.bf16.msra.mxu0 %v1516
  %1538 = vmatpush.bf16.msra.mxu0 %v1515
  %1539 = vmatmul.bf16.gmra.mxu0 %v1467
  %v1540 = vpop.f32.mrf.mxu0
  %v1541 = vadd.f32 %v1481, %v1540
  %v1542 = vpop.f32.mrf.mxu0
  %v1543 = vadd.f32 %v1481, %v1542
  %1544 = vmatmul.bf16.gmra.mxu0 %v1468
  %v1545 = vpop.f32.mrf.mxu0
  %v1546 = vadd.f32 %v1481, %v1545
  %v1547 = vpop.f32.mrf.mxu0
  %v1548 = vadd.f32 %v1481, %v1547
  %1549 = vmatmul.bf16.gmra.mxu0 %v1469
  %v1550 = vpop.f32.mrf.mxu0
  %v1551 = vadd.f32 %v1481, %v1550
  %v1552 = vpop.f32.mrf.mxu0
  %v1553 = vadd.f32 %v1481, %v1552
  %1554 = vmatmul.bf16.gmra.mxu0 %v1470
  %v1555 = vpop.f32.mrf.mxu0
  %v1556 = vadd.f32 %v1481, %v1555
  %v1557 = vpop.f32.mrf.mxu0
  %v1558 = vadd.f32 %v1481, %v1557
  %1559 = vmatmul.bf16.gmra.mxu0 %v1471
  %v1560 = vpop.f32.mrf.mxu0
  %v1561 = vadd.f32 %v1481, %v1560
  %v1562 = vpop.f32.mrf.mxu0
  %v1563 = vadd.f32 %v1481, %v1562
  %1564 = vmatmul.bf16.gmra.mxu0 %v1472
  %v1565 = vpop.f32.mrf.mxu0
  %v1566 = vadd.f32 %v1481, %v1565
  %v1567 = vpop.f32.mrf.mxu0
  %v1568 = vadd.f32 %v1481, %v1567
  %1569 = vmatmul.bf16.gmra.mxu0 %v1473
  %v1570 = vpop.f32.mrf.mxu0
  %v1571 = vadd.f32 %v1481, %v1570
  %v1572 = vpop.f32.mrf.mxu0
  %v1573 = vadd.f32 %v1481, %v1572
  %1574 = vmatmul.bf16.gmra.mxu0 %v1474
  %v1575 = vpop.f32.mrf.mxu0
  %v1576 = vadd.f32 %v1481, %v1575
  %v1577 = vpop.f32.mrf.mxu0
  %v1578 = vadd.f32 %v1481, %v1577
  %1579 = vmatmul.bf16.gmra.mxu0 %v1475
  %v1580 = vpop.f32.mrf.mxu0
  %v1581 = vadd.f32 %v1481, %v1580
  %v1582 = vpop.f32.mrf.mxu0
  %v1583 = vadd.f32 %v1481, %v1582
  %1584 = vmatmul.bf16.gmra.mxu0 %v1476
  %v1585 = vpop.f32.mrf.mxu0
  %v1586 = vadd.f32 %v1481, %v1585
  %v1587 = vpop.f32.mrf.mxu0
  %v1588 = vadd.f32 %v1481, %v1587
  %1589 = vmatmul.bf16.gmra.mxu0 %v1477
  %v1590 = vpop.f32.mrf.mxu0
  %v1591 = vadd.f32 %v1481, %v1590
  %v1592 = vpop.f32.mrf.mxu0
  %v1593 = vadd.f32 %v1481, %v1592
  %1594 = vmatmul.bf16.gmra.mxu0 %v1478
  %v1595 = vpop.f32.mrf.mxu0
  %v1596 = vadd.f32 %v1481, %v1595
  %v1597 = vpop.f32.mrf.mxu0
  %v1598 = vadd.f32 %v1481, %v1597
  %1599 = vmatmul.bf16.gmra.mxu0 %v1479
  %v1600 = vpop.f32.mrf.mxu0
  %v1601 = vadd.f32 %v1481, %v1600
  %v1602 = vpop.f32.mrf.mxu0
  %v1603 = vadd.f32 %v1481, %v1602
  %1604 = vdwg.mxu0
  %v1605 = vmax.f32 %v1541, 0.0
  %v1606 = vmax.f32 %v1543, 0.0
  %v1607 = vmax.f32 %v1546, 0.0
  %v1608 = vmax.f32 %v1548, 0.0
  %v1609 = vmax.f32 %v1551, 0.0
  %v1610 = vmax.f32 %v1553, 0.0
  %v1611 = vmax.f32 %v1556, 0.0
  %v1612 = vmax.f32 %v1558, 0.0
  %v1613 = vmax.f32 %v1561, 0.0
  %v1614 = vmax.f32 %v1563, 0.0
  %v1615 = vmax.f32 %v1566, 0.0
  %v1616 = vmax.f32 %v1568, 0.0
  %v1617 = vmax.f32 %v1571, 0.0
  %v1618 = vmax.f32 %v1573, 0.0
  %v1619 = vmax.f32 %v1576, 0.0
  %v1620 = vmax.f32 %v1578, 0.0
  %v1621 = vmax.f32 %v1581, 0.0
  %v1622 = vmax.f32 %v1583, 0.0
  %v1623 = vmax.f32 %v1586, 0.0
  %v1624 = vmax.f32 %v1588, 0.0
  %v1625 = vmax.f32 %v1591, 0.0
  %v1626 = vmax.f32 %v1593, 0.0
  %v1627 = vmax.f32 %v1596, 0.0
  %v1628 = vmax.f32 %v1598, 0.0
  %v1629 = vmax.f32 %v1601, 0.0
  %v1630 = vmax.f32 %v1603, 0.0
  %s1631 = scalar_lea.vmem %s2, 384
  %v1632 = vld [vmem:[%s1631] sm:$0xf]
  %v1633 = vld [vmem:[%s1631 + $0x4] sm:$0xf]
  %v1634 = vld [vmem:[%s1631 + $0x8] sm:$0xf]
  %v1635 = vld [vmem:[%s1631 + $0xc] sm:$0xf]
  %v1636 = vld [vmem:[%s1631 + $0x10] sm:$0xf]
  %v1637 = vld [vmem:[%s1631 + $0x14] sm:$0xf]
  %v1638 = vld [vmem:[%s1631 + $0x18] sm:$0xf]
  %v1639 = vld [vmem:[%s1631 + $0x1c] sm:$0xf]
  %v1640 = vld [vmem:[%s1631 + $0x20] sm:$0xf]
  %v1641 = vld [vmem:[%s1631 + $0x24] sm:$0xf]
  %v1642 = vld [vmem:[%s1631 + $0x28] sm:$0xf]
  %v1643 = vld [vmem:[%s1631 + $0x2c] sm:$0xf]
  %v1644 = vld [vmem:[%s1631 + $0x30] sm:$0xf]
  %v1645 = vld [vmem:[%s1631 + $0x34] sm:$0xf]
  %v1646 = vld [vmem:[%s1631 + $0x38] sm:$0xf]
  %v1647 = vld [vmem:[%s1631 + $0x3c] sm:$0xf]
  %s1648 = scalar_lea.vmem %s3, 6
  %v1649 = vld [vmem:[%s1648] sm:$0x1]
  %v1650 = vpack.c.bf16 %v1606, %v1605
  %v1651 = vpack.c.bf16 %v1608, %v1607
  %v1652 = vpack.c.bf16 %v1610, %v1609
  %v1653 = vpack.c.bf16 %v1612, %v1611
  %v1654 = vpack.c.bf16 %v1614, %v1613
  %v1655 = vpack.c.bf16 %v1616, %v1615
  %v1656 = vpack.c.bf16 %v1618, %v1617
  %v1657 = vpack.c.bf16 %v1620, %v1619
  %v1658 = vpack.c.bf16 %v1622, %v1621
  %v1659 = vpack.c.bf16 %v1624, %v1623
  %v1660 = vpack.c.bf16 %v1626, %v1625
  %v1661 = vpack.c.bf16 %v1628, %v1627
  %v1662 = vpack.c.bf16 %v1630, %v1629
  %v1664 = vperm.slane %v1649, 0
  %v1682 = vunpack.c.l.b16 %v1632
  %v1683 = vunpack.c.l.b16 %v1633
  %v1684 = vunpack.c.l.b16 %v1634
  %v1685 = vunpack.c.l.b16 %v1635
  %v1686 = vunpack.c.l.b16 %v1636
  %v1687 = vunpack.c.l.b16 %v1637
  %v1688 = vunpack.c.l.b16 %v1638
  %v1689 = vunpack.c.l.b16 %v1639
  %v1690 = vunpack.c.l.b16 %v1640
  %v1691 = vunpack.c.l.b16 %v1641
  %v1692 = vunpack.c.l.b16 %v1642
  %v1693 = vunpack.c.l.b16 %v1643
  %v1694 = vunpack.c.l.b16 %v1644
  %v1695 = vunpack.c.l.b16 %v1645
  %v1696 = vunpack.c.l.b16 %v1646
  %v1697 = vunpack.c.l.b16 %v1647
  %v1698 = vpack.c.b16 %v1683, %v1682
  %v1699 = vpack.c.b16 %v1685, %v1684
  %v1700 = vpack.c.b16 %v1687, %v1686
  %v1701 = vpack.c.b16 %v1689, %v1688
  %v1702 = vpack.c.b16 %v1691, %v1690
  %v1703 = vpack.c.b16 %v1693, %v1692
  %v1704 = vpack.c.b16 %v1695, %v1694
  %v1705 = vpack.c.b16 %v1697, %v1696
  %1714 = vmatpush.bf16.msra.mxu0 %v1705
  %1715 = vmatpush.bf16.msra.mxu0 %v1704
  %1716 = vmatpush.bf16.msra.mxu0 %v1703
  %1717 = vmatpush.bf16.msra.mxu0 %v1702
  %1718 = vmatpush.bf16.msra.mxu0 %v1701
  %1719 = vmatpush.bf16.msra.mxu0 %v1700
  %1720 = vmatpush.bf16.msra.mxu0 %v1699
  %1721 = vmatpush.bf16.msra.mxu0 %v1698
  %1722 = vmatmul.bf16.gmra.mxu0 %v1650
  %v1723 = vpop.f32.mrf.mxu0
  %v1724 = vadd.f32 %v1664, %v1723
  %v1725 = vpop.f32.mrf.mxu0
  %v1726 = vadd.f32 %v1664, %v1725
  %1727 = vmatmul.bf16.gmra.mxu0 %v1651
  %v1728 = vpop.f32.mrf.mxu0
  %v1729 = vadd.f32 %v1664, %v1728
  %v1730 = vpop.f32.mrf.mxu0
  %v1731 = vadd.f32 %v1664, %v1730
  %1732 = vmatmul.bf16.gmra.mxu0 %v1652
  %v1733 = vpop.f32.mrf.mxu0
  %v1734 = vadd.f32 %v1664, %v1733
  %v1735 = vpop.f32.mrf.mxu0
  %v1736 = vadd.f32 %v1664, %v1735
  %1737 = vmatmul.bf16.gmra.mxu0 %v1653
  %v1738 = vpop.f32.mrf.mxu0
  %v1739 = vadd.f32 %v1664, %v1738
  %v1740 = vpop.f32.mrf.mxu0
  %v1741 = vadd.f32 %v1664, %v1740
  %1742 = vmatmul.bf16.gmra.mxu0 %v1654
  %v1743 = vpop.f32.mrf.mxu0
  %v1744 = vadd.f32 %v1664, %v1743
  %v1745 = vpop.f32.mrf.mxu0
  %v1746 = vadd.f32 %v1664, %v1745
  %1747 = vmatmul.bf16.gmra.mxu0 %v1655
  %v1748 = vpop.f32.mrf.mxu0
  %v1749 = vadd.f32 %v1664, %v1748
  %v1750 = vpop.f32.mrf.mxu0
  %v1751 = vadd.f32 %v1664, %v1750
  %1752 = vmatmul.bf16.gmra.mxu0 %v1656
  %v1753 = vpop.f32.mrf.mxu0
  %v1754 = vadd.f32 %v1664, %v1753
  %v1755 = vpop.f32.mrf.mxu0
  %v1756 = vadd.f32 %v1664, %v1755
  %1757 = vmatmul.bf16.gmra.mxu0 %v1657
  %v1758 = vpop.f32.mrf.mxu0
  %v1759 = vadd.f32 %v1664, %v1758
  %v1760 = vpop.f32.mrf.mxu0
  %v1761 = vadd.f32 %v1664, %v1760
  %1762 = vmatmul.bf16.gmra.mxu0 %v1658
  %v1763 = vpop.f32.mrf.mxu0
  %v1764 = vadd.f32 %v1664, %v1763
  %v1765 = vpop.f32.mrf.mxu0
  %v1766 = vadd.f32 %v1664, %v1765
  %1767 = vmatmul.bf16.gmra.mxu0 %v1659
  %v1768 = vpop.f32.mrf.mxu0
  %v1769 = vadd.f32 %v1664, %v1768
  %v1770 = vpop.f32.mrf.mxu0
  %v1771 = vadd.f32 %v1664, %v1770
  %1772 = vmatmul.bf16.gmra.mxu0 %v1660
  %v1773 = vpop.f32.mrf.mxu0
  %v1774 = vadd.f32 %v1664, %v1773
  %v1775 = vpop.f32.mrf.mxu0
  %v1776 = vadd.f32 %v1664, %v1775
  %1777 = vmatmul.bf16.gmra.mxu0 %v1661
  %v1778 = vpop.f32.mrf.mxu0
  %v1779 = vadd.f32 %v1664, %v1778
  %v1780 = vpop.f32.mrf.mxu0
  %v1781 = vadd.f32 %v1664, %v1780
  %1782 = vmatmul.bf16.gmra.mxu0 %v1662
  %v1783 = vpop.f32.mrf.mxu0
  %v1784 = vadd.f32 %v1664, %v1783
  %v1785 = vpop.f32.mrf.mxu0
  %v1786 = vadd.f32 %v1664, %v1785
  %1787 = vdwg.mxu0
  %1788 = vst [vmem:[%s6] sm:$0xff] %v1724
  %1789 = vst [vmem:[%s6 + $0x8] sm:$0xff] %v1726
  %1790 = vst [vmem:[%s6 + $0x10] sm:$0xff] %v1729
  %1791 = vst [vmem:[%s6 + $0x18] sm:$0xff] %v1731
  %1792 = vst [vmem:[%s6 + $0x20] sm:$0xff] %v1734
  %1793 = vst [vmem:[%s6 + $0x28] sm:$0xff] %v1736
  %1794 = vst [vmem:[%s6 + $0x30] sm:$0xff] %v1739
  %1795 = vst [vmem:[%s6 + $0x38] sm:$0xff] %v1741
  %1796 = vst [vmem:[%s6 + $0x40] sm:$0xff] %v1744
  %1797 = vst [vmem:[%s6 + $0x48] sm:$0xff] %v1746
  %1798 = vst [vmem:[%s6 + $0x50] sm:$0xff] %v1749
  %1799 = vst [vmem:[%s6 + $0x58] sm:$0xff] %v1751
  %1800 = vst [vmem:[%s6 + $0x60] sm:$0xff] %v1754
  %1801 = vst [vmem:[%s6 + $0x68] sm:$0xff] %v1756
  %1802 = vst [vmem:[%s6 + $0x70] sm:$0xff] %v1759
  %1803 = vst [vmem:[%s6 + $0x78] sm:$0xff] %v1761
  %1804 = vst [vmem:[%s6 + $0x80] sm:$0xff] %v1764
  %1805 = vst [vmem:[%s6 + $0x88] sm:$0xff] %v1766
  %1806 = vst [vmem:[%s6 + $0x90] sm:$0xff] %v1769
  %1807 = vst [vmem:[%s6 + $0x98] sm:$0xff] %v1771
  %1808 = vst [vmem:[%s6 + $0xa0] sm:$0xff] %v1774
  %1809 = vst [vmem:[%s6 + $0xa8] sm:$0xff] %v1776
  %1810 = vst [vmem:[%s6 + $0xb0] sm:$0xff] %v1779
  %1811 = vst [vmem:[%s6 + $0xb8] sm:$0xff] %v1781
  %1812 = vst [vmem:[%s6 + $0xc0] sm:$0xff] %v1784
  %1813 = vst [vmem:[%s6 + $0xc8] sm:$0xff] %v1786
  %1814 = vst [vmem:[%s7] sm:$0xff] %v788
  %1815 = vst [vmem:[%s7 + $0x8] sm:$0xff] %v862
  %1816 = vst [vmem:[%s7 + $0x10] sm:$0xff] %v790
  %1817 = vst [vmem:[%s7 + $0x18] sm:$0xff] %v864
  %1818 = vst [vmem:[%s7 + $0x20] sm:$0xff] %v793
  %1819 = vst [vmem:[%s7 + $0x28] sm:$0xff] %v867
  %1820 = vst [vmem:[%s7 + $0x30] sm:$0xff] %v795
  %1821 = vst [vmem:[%s7 + $0x38] sm:$0xff] %v869
  %1822 = vst [vmem:[%s7 + $0x40] sm:$0xff] %v798
  %1823 = vst [vmem:[%s7 + $0x48] sm:$0xff] %v872
  %1824 = vst [vmem:[%s7 + $0x50] sm:$0xff] %v800
  %1825 = vst [vmem:[%s7 + $0x58] sm:$0xff] %v874
  %1826 = vst [vmem:[%s7 + $0x60] sm:$0xff] %v803
  %1827 = vst [vmem:[%s7 + $0x68] sm:$0xff] %v877
  %1828 = vst [vmem:[%s7 + $0x70] sm:$0xff] %v805
  %1829 = vst [vmem:[%s7 + $0x78] sm:$0xff] %v879
  %1830 = vst [vmem:[%s7 + $0x80] sm:$0xff] %v808
  %1831 = vst [vmem:[%s7 + $0x88] sm:$0xff] %v882
  %1832 = vst [vmem:[%s7 + $0x90] sm:$0xff] %v810
  %1833 = vst [vmem:[%s7 + $0x98] sm:$0xff] %v884
  %1834 = vst [vmem:[%s7 + $0xa0] sm:$0xff] %v813
  %1835 = vst [vmem:[%s7 + $0xa8] sm:$0xff] %v887
  %1836 = vst [vmem:[%s7 + $0xb0] sm:$0xff] %v815
  %1837 = vst [vmem:[%s7 + $0xb8] sm:$0xff] %v889
  %1838 = vst [vmem:[%s7 + $0xc0] sm:$0xff] %v818
  %1839 = vst [vmem:[%s7 + $0xc8] sm:$0xff] %v892
  %1840 = vst [vmem:[%s7 + $0xd0] sm:$0xff] %v820
  %1841 = vst [vmem:[%s7 + $0xd8] sm:$0xff] %v894
  %1842 = vst [vmem:[%s7 + $0xe0] sm:$0xff] %v823
  %1843 = vst [vmem:[%s7 + $0xe8] sm:$0xff] %v897
  %1844 = vst [vmem:[%s7 + $0xf0] sm:$0xff] %v825
  %1845 = vst [vmem:[%s7 + $0xf8] sm:$0xff] %v899
  %1846 = vst [vmem:[%s7 + $0x100] sm:$0xff] %v828
  %1847 = vst [vmem:[%s7 + $0x108] sm:$0xff] %v902
  %1848 = vst [vmem:[%s7 + $0x110] sm:$0xff] %v830
  %1849 = vst [vmem:[%s7 + $0x118] sm:$0xff] %v904
  %1850 = vst [vmem:[%s7 + $0x120] sm:$0xff] %v833
  %1851 = vst [vmem:[%s7 + $0x128] sm:$0xff] %v907
  %1852 = vst [vmem:[%s7 + $0x130] sm:$0xff] %v835
  %1853 = vst [vmem:[%s7 + $0x138] sm:$0xff] %v909
  %1854 = vst [vmem:[%s7 + $0x140] sm:$0xff] %v838
  %1855 = vst [vmem:[%s7 + $0x148] sm:$0xff] %v912
  %1856 = vst [vmem:[%s7 + $0x150] sm:$0xff] %v840
  %1857 = vst [vmem:[%s7 + $0x158] sm:$0xff] %v914
  %1858 = vst [vmem:[%s7 + $0x160] sm:$0xff] %v843
  %1859 = vst [vmem:[%s7 + $0x168] sm:$0xff] %v917
  %1860 = vst [vmem:[%s7 + $0x170] sm:$0xff] %v845
  %1861 = vst [vmem:[%s7 + $0x178] sm:$0xff] %v919
  %1862 = vst [vmem:[%s7 + $0x180] sm:$0xff] %v848
  %1863 = vst [vmem:[%s7 + $0x188] sm:$0xff] %v922
  %1864 = vst [vmem:[%s7 + $0x190] sm:$0xff] %v850
  %1865 = vst [vmem:[%s7 + $0x198] sm:$0xff] %v924
  // Predicated region
  $region26: #{forward.1} parent=0 // pred_check
    _
  $region27: #{forward.1} parent=0 // pred_check_branch
    %1867 = sbr.rel (0) target = $region29
  $region28: #{forward.1} parent=0 // pred_region
    _
  $region29: #{forward.1} parent=0 // pred_fallthru
    _
  // Predicated region
  $region30: #{forward.1} parent=0 // pred_check
    _
  $region31: #{forward.1} parent=0 // pred_check_branch
    %1869 = sbr.rel (0) target = $region33
  $region32: #{forward.1} parent=0 // pred_region
    _
  $region33: #{forward.1} parent=0 // pred_fallthru
    _
  // Predicated region
  $region34: #{forward.1} parent=0 // pred_check
    _
  $region35: #{forward.1} parent=0 // pred_check_branch
    %1871 = sbr.rel (0) target = $region37
  $region36: #{forward.1} parent=0 // pred_region
    _
  $region37: #{forward.1} parent=0 // pred_fallthru
    _
  // Predicated region
  $region38: #{forward.1} parent=0 // pred_check
    _
  $region39: #{forward.1} parent=0 // pred_check_branch
    %1873 = sbr.rel (0) target = $region41
  $region40: #{forward.1} parent=0 // pred_region
    _
  $region41: #{forward.1} parent=0 // pred_fallthru
    _

</llo_original>
